<compile_context>
chip_gen: v6e
topology: v6e:2x2x1
jax: 0.10.0
libtpu: 0.0.40
codegen_flags: <defaults>
</compile_context>

<pallas_src>
import math
import functools

import jax
import jax.numpy as jnp
import numpy as np
from jax.experimental import pallas as pl
from jax.experimental.pallas import tpu as pltpu


_W_ORDER = ["wqkv", "bqkv", "wo", "bo", "g1", "b1n",
            "w1", "bff1", "w2", "bff2", "g2", "b2n"]


def _layer_norm(x, gamma, beta, eps=1e-5):
    mu = jnp.mean(x, axis=-1, keepdims=True)
    var = jnp.mean((x - mu) ** 2, axis=-1, keepdims=True)
    return (x - mu) * jax.lax.rsqrt(var + eps) * gamma + beta


# ----------------------------------------------------------------------------
# Single fused kernel: scale + 2 x (self-attn -> add&norm -> FFN -> add&norm)
# ----------------------------------------------------------------------------
def fused_transformer_kernel(
    x_ref,                                  # (S, B, E)  PyTorch (seq, batch, embed)
    wqkv_ref, bqkv_ref,                     # (L, E, 3E), (L, 1, 3E)
    wo_ref, bo_ref,                         # (L, E, E),  (L, 1, E)
    g1_ref, b1n_ref,                        # (L, 1, E)
    w1_ref, bff1_ref,                       # (L, E, H),  (L, 1, H)
    w2_ref, bff2_ref,                       # (L, H, E),  (L, 1, E)
    g2_ref, b2n_ref,                        # (L, 1, E)
    o_ref,                                  # (S, B, E)
    *, scale,
):
    S, B, E = x_ref.shape
    L = wqkv_ref.shape[0]
    inv_sqrt_d = 1.0 / math.sqrt(E)         # nhead=1 -> head_dim = E

    # src * sqrt(ninp), then to batch-major rows: (B*S, E)
    x = x_ref[...].astype(jnp.float32) * scale            # (S, B, E)
    x = jnp.transpose(x, (1, 0, 2)).reshape(B * S, E)     # (B*S, E)

    for l in range(L):                                    # statically unrolled (L=2)
        # ---- single-head self-attention (fused QKV projection) -------------
        qkv = jnp.dot(x, wqkv_ref[l], preferred_element_type=jnp.float32) + bqkv_ref[l]
        q = (qkv[:, 0 * E:1 * E] * inv_sqrt_d).reshape(B, S, E)
        k = qkv[:, 1 * E:2 * E].reshape(B, S, E)
        v = qkv[:, 2 * E:3 * E].reshape(B, S, E)

        s = jnp.einsum("bqe,bke->bqk", q, k,
                       preferred_element_type=jnp.float32)           # (B, S, S)
        s = s - jnp.max(s, axis=-1, keepdims=True)
        p = jnp.exp(s)
        p = p * pl.reciprocal(jnp.sum(p, axis=-1, keepdims=True), approx=True)

        attn = jnp.einsum("bqk,bke->bqe", p, v,
                          preferred_element_type=jnp.float32)         # (B, S, E)
        attn = attn.reshape(B * S, E)
        attn = jnp.dot(attn, wo_ref[l], preferred_element_type=jnp.float32) + bo_ref[l]

        # ---- residual + LayerNorm1 ------------------------------------------
        x = _layer_norm(x + attn, g1_ref[l], b1n_ref[l])

        # ---- feed-forward (ReLU) --------------------------------------------
        h = jnp.dot(x, w1_ref[l], preferred_element_type=jnp.float32) + bff1_ref[l]
        h = jnp.maximum(h, 0.0)
        y = jnp.dot(h, w2_ref[l], preferred_element_type=jnp.float32) + bff2_ref[l]

        # ---- residual + LayerNorm2 ------------------------------------------
        x = _layer_norm(x + y, g2_ref[l], b2n_ref[l])

    # back to PyTorch (S, B, E) layout
    o_ref[...] = jnp.transpose(x.reshape(B, S, E), (1, 0, 2)).astype(o_ref.dtype)


def transformer_model_forward(src_sbe, stacked_params, ninp):
    """Full TransformerModel.forward. src_sbe: (S, B, E). Returns (S, B, E)."""
    S, B, E = src_sbe.shape
    weights = [stacked_params[k] for k in _W_ORDER]
    kernel = functools.partial(fused_transformer_kernel, scale=float(math.sqrt(ninp)))

    vmem = pl.BlockSpec(memory_space=pltpu.MemorySpace.VMEM)
    return pl.pallas_call(
        kernel,
        in_specs=[vmem] * (1 + len(weights)),
        out_specs=vmem,
        out_shape=jax.ShapeDtypeStruct((S, B, E), src_sbe.dtype),
    )(src_sbe, *weights)


# ----------------------------------------------------------------------------
# Pure-JAX reference (same eval semantics) for correctness checking
# ----------------------------------------------------------------------------
def _ref_ln(x, g, b, eps=1e-5):
    mu = x.mean(-1, keepdims=True)
    var = ((x - mu) ** 2).mean(-1, keepdims=True)
    return (x - mu) / jnp.sqrt(var + eps) * g + b


def ref_forward(src_sbe, sp, ninp):
    S, B, E = src_sbe.shape
    x = jnp.transpose(src_sbe, (1, 0, 2)) * math.sqrt(ninp)   # (B, S, E)
    L = sp["wqkv"].shape[0]
    for l in range(L):
        qkv = x @ sp["wqkv"][l] + sp["bqkv"][l]
        q = qkv[..., 0 * E:1 * E] / math.sqrt(E)
        k = qkv[..., 1 * E:2 * E]
        v = qkv[..., 2 * E:3 * E]
        s = jnp.einsum("bqe,bke->bqk", q, k)
        a = jax.nn.softmax(s, axis=-1)
        attn = jnp.einsum("bqk,bke->bqe", a, v) @ sp["wo"][l] + sp["bo"][l]
        x = _ref_ln(x + attn, sp["g1"][l], sp["b1n"][l])
        h = jax.nn.relu(x @ sp["w1"][l] + sp["bff1"][l])
        y = h @ sp["w2"][l] + sp["bff2"][l]
        x = _ref_ln(x + y, sp["g2"][l], sp["b2n"][l])
    return jnp.transpose(x, (1, 0, 2))


# ----------------------------------------------------------------------------
# Deterministic parameter construction (synthetic, not a checkpoint load)
# ----------------------------------------------------------------------------
def make_stacked_params(key, ninp, nhid, nlayers):
    per_layer = []
    for lk in jax.random.split(key, nlayers):
        ks = jax.random.split(lk, 12)
        n = lambda kk, shp, s=0.05: (s * jax.random.normal(kk, shp)).astype(jnp.float32)
        per_layer.append({
            "wqkv": n(ks[0], (ninp, 3 * ninp)), "bqkv": n(ks[1], (1, 3 * ninp)),
            "wo": n(ks[2], (ninp, ninp)), "bo": n(ks[3], (1, ninp)),
            "g1": 1.0 + n(ks[4], (1, ninp), 0.1), "b1n": n(ks[5], (1, ninp), 0.1),
            "w1": n(ks[6], (ninp, nhid)), "bff1": n(ks[7], (1, nhid)),
            "w2": n(ks[8], (nhid, ninp)), "bff2": n(ks[9], (1, ninp)),
            "g2": 1.0 + n(ks[10], (1, ninp), 0.1), "b2n": n(ks[11], (1, ninp), 0.1),
        })
    return {k: jnp.stack([p[k] for p in per_layer], axis=0) for k in per_layer[0]}


if __name__ == "__main__":
    # Shapes consistent with the module: cfg.MODEL.NUM_FEATURES = 32,
    # nhead=1, nhid=512, nlayers=2. Input is (S, B, E) = (8, 2, 32).
    S, B, NINP, NHID, NLAYERS = 8, 2, 32, 512, 2

    root = jax.random.PRNGKey(0)
    k_src, k_par = jax.random.split(root, 2)
    src = jax.random.normal(k_src, (S, B, NINP), dtype=jnp.float32)
    params = make_stacked_params(k_par, NINP, NHID, NLAYERS)

    out = transformer_model_forward(src, params, NINP)
    out = jax.block_until_ready(out)

    ref = jax.block_until_ready(ref_forward(src, params, NINP))
    assert out.shape == (S, B, NINP)
    # tolerance relaxed slightly vs. f32 exact because of pl.reciprocal(approx=True)
    np.testing.assert_allclose(np.asarray(out), np.asarray(ref), rtol=1e-3, atol=1e-3)

    print("KERNEL_OK")
</pallas_src>

<mosaic_0001>
module attributes {stable_mosaic.version = 11 : i64} {
  func.func @fused_transformer_kernel(%arg0: memref<8x2x32xf32, #tpu.memory_space<vmem>>, %arg1: memref<2x32x96xf32, #tpu.memory_space<vmem>>, %arg2: memref<2x1x96xf32, #tpu.memory_space<vmem>>, %arg3: memref<2x32x32xf32, #tpu.memory_space<vmem>>, %arg4: memref<2x1x32xf32, #tpu.memory_space<vmem>>, %arg5: memref<2x1x32xf32, #tpu.memory_space<vmem>>, %arg6: memref<2x1x32xf32, #tpu.memory_space<vmem>>, %arg7: memref<2x32x512xf32, #tpu.memory_space<vmem>>, %arg8: memref<2x1x512xf32, #tpu.memory_space<vmem>>, %arg9: memref<2x512x32xf32, #tpu.memory_space<vmem>>, %arg10: memref<2x1x32xf32, #tpu.memory_space<vmem>>, %arg11: memref<2x1x32xf32, #tpu.memory_space<vmem>>, %arg12: memref<2x1x32xf32, #tpu.memory_space<vmem>>, %arg13: memref<8x2x32xf32, #tpu.memory_space<vmem>>) attributes {dimension_semantics = [], scalar_prefetch = 0 : i64, scratch_operands = 0 : i64, tpu.core_type = #tpu.core_type<tc>} {
    %c0 = arith.constant 0 : index
    %c0_0 = arith.constant 0 : index
    %c0_1 = arith.constant 0 : index
    %0 = vector.load %arg0[%c0, %c0_0, %c0_1] : memref<8x2x32xf32, #tpu.memory_space<vmem>>, vector<8x2x32xf32>
    %cst = arith.constant 5.65685415 : f32
    %1 = vector.broadcast %cst : f32 to vector<8x2x32xf32>
    %2 = arith.mulf %0, %1 : vector<8x2x32xf32>
    %3 = tpu.transpose %2, [1, 0, 2] : vector<8x2x32xf32> -> vector<2x8x32xf32>
    %4 = vector.shape_cast %3 : vector<2x8x32xf32> to vector<16x32xf32>
    %c0_2 = arith.constant 0 : index
    %c0_3 = arith.constant 0 : index
    %c0_4 = arith.constant 0 : index
    %5 = vector.load %arg1[%c0_2, %c0_3, %c0_4] : memref<2x32x96xf32, #tpu.memory_space<vmem>>, vector<1x32x96xf32>
    %6 = vector.shape_cast %5 : vector<1x32x96xf32> to vector<32x96xf32>
    %cst_5 = arith.constant dense<0.000000e+00> : vector<16x96xf32>
    %7 = tpu.matmul %4, %6, %cst_5 {dimension_numbers = #tpu.dot_dimension_numbers<[1], [0], [0], [1], [0, 0, 1, 1], [], []>} : vector<16x32xf32>, vector<32x96xf32>, vector<16x96xf32> -> vector<16x96xf32>
    %c0_6 = arith.constant 0 : index
    %c0_7 = arith.constant 0 : index
    %c0_8 = arith.constant 0 : index
    %8 = vector.load %arg2[%c0_6, %c0_7, %c0_8] : memref<2x1x96xf32, #tpu.memory_space<vmem>>, vector<1x1x96xf32>
    %9 = vector.shape_cast %8 : vector<1x1x96xf32> to vector<1x96xf32>
    %10 = vector.broadcast %9 : vector<1x96xf32> to vector<16x96xf32>
    %11 = arith.addf %7, %10 : vector<16x96xf32>
    %12 = vector.extract_strided_slice %11 {offsets = [0, 0], sizes = [16, 32], strides = [1, 1]} : vector<16x96xf32> to vector<16x32xf32>
    %cst_9 = arith.constant 0.176776692 : f32
    %13 = vector.broadcast %cst_9 : f32 to vector<16x32xf32>
    %14 = arith.mulf %12, %13 : vector<16x32xf32>
    %15 = vector.shape_cast %14 : vector<16x32xf32> to vector<2x8x32xf32>
    %16 = vector.extract_strided_slice %11 {offsets = [0, 32], sizes = [16, 32], strides = [1, 1]} : vector<16x96xf32> to vector<16x32xf32>
    %17 = vector.shape_cast %16 : vector<16x32xf32> to vector<2x8x32xf32>
    %18 = vector.extract_strided_slice %11 {offsets = [0, 64], sizes = [16, 32], strides = [1, 1]} : vector<16x96xf32> to vector<16x32xf32>
    %19 = vector.shape_cast %18 : vector<16x32xf32> to vector<2x8x32xf32>
    "tpu.trace_start"() <{level = 10 : i32, message = "bqe,bke->bqk"}> : () -> ()
    %cst_10 = arith.constant dense<0.000000e+00> : vector<2x8x8xf32>
    %20 = tpu.matmul %15, %17, %cst_10 {dimension_numbers = #tpu.dot_dimension_numbers<[2], [2], [1], [1], [0, 0, 0, 1, 1, 1], [0], [0]>} : vector<2x8x32xf32>, vector<2x8x32xf32>, vector<2x8x8xf32> -> vector<2x8x8xf32>
    "tpu.trace_stop"() : () -> ()
    %cst_11 = arith.constant dense<0xFF800000> : vector<2x8xf32>
    %21 = vector.multi_reduction <maximumf>, %20, %cst_11 [2] : vector<2x8x8xf32> to vector<2x8xf32>
    %22 = vector.shape_cast %21 : vector<2x8xf32> to vector<2x8x1xf32>
    %23 = vector.broadcast %22 : vector<2x8x1xf32> to vector<2x8x8xf32>
    %24 = arith.subf %20, %23 : vector<2x8x8xf32>
    %25 = math.exp %24 : vector<2x8x8xf32>
    %cst_12 = arith.constant dense<0.000000e+00> : vector<2x8xf32>
    %26 = vector.multi_reduction <add>, %25, %cst_12 [2] : vector<2x8x8xf32> to vector<2x8xf32>
    %27 = vector.shape_cast %26 : vector<2x8xf32> to vector<2x8x1xf32>
    %28 = tpu.reciprocal %27 {approx = true} : vector<2x8x1xf32> -> vector<2x8x1xf32>
    %29 = vector.broadcast %28 : vector<2x8x1xf32> to vector<2x8x8xf32>
    %30 = arith.mulf %25, %29 : vector<2x8x8xf32>
    "tpu.trace_start"() <{level = 10 : i32, message = "bqk,bke->bqe"}> : () -> ()
    %cst_13 = arith.constant dense<0.000000e+00> : vector<2x8x32xf32>
    %31 = tpu.matmul %30, %19, %cst_13 {dimension_numbers = #tpu.dot_dimension_numbers<[2], [1], [1], [2], [0, 0, 0, 1, 1, 2], [0], [0]>} : vector<2x8x8xf32>, vector<2x8x32xf32>, vector<2x8x32xf32> -> vector<2x8x32xf32>
    "tpu.trace_stop"() : () -> ()
    %32 = vector.shape_cast %31 : vector<2x8x32xf32> to vector<16x32xf32>
    %c0_14 = arith.constant 0 : index
    %c0_15 = arith.constant 0 : index
    %c0_16 = arith.constant 0 : index
    %33 = vector.load %arg3[%c0_14, %c0_15, %c0_16] : memref<2x32x32xf32, #tpu.memory_space<vmem>>, vector<1x32x32xf32>
    %34 = vector.shape_cast %33 : vector<1x32x32xf32> to vector<32x32xf32>
    %cst_17 = arith.constant dense<0.000000e+00> : vector<16x32xf32>
    %35 = tpu.matmul %32, %34, %cst_17 {dimension_numbers = #tpu.dot_dimension_numbers<[1], [0], [0], [1], [0, 0, 1, 1], [], []>} : vector<16x32xf32>, vector<32x32xf32>, vector<16x32xf32> -> vector<16x32xf32>
    %c0_18 = arith.constant 0 : index
    %c0_19 = arith.constant 0 : index
    %c0_20 = arith.constant 0 : index
    %36 = vector.load %arg4[%c0_18, %c0_19, %c0_20] : memref<2x1x32xf32, #tpu.memory_space<vmem>>, vector<1x1x32xf32>
    %37 = vector.shape_cast %36 : vector<1x1x32xf32> to vector<1x32xf32>
    %38 = vector.broadcast %37 : vector<1x32xf32> to vector<16x32xf32>
    %39 = arith.addf %35, %38 : vector<16x32xf32>
    %40 = arith.addf %4, %39 : vector<16x32xf32>
    %c0_21 = arith.constant 0 : index
    %c0_22 = arith.constant 0 : index
    %c0_23 = arith.constant 0 : index
    %41 = vector.load %arg5[%c0_21, %c0_22, %c0_23] : memref<2x1x32xf32, #tpu.memory_space<vmem>>, vector<1x1x32xf32>
    %42 = vector.shape_cast %41 : vector<1x1x32xf32> to vector<1x32xf32>
    %c0_24 = arith.constant 0 : index
    %c0_25 = arith.constant 0 : index
    %c0_26 = arith.constant 0 : index
    %43 = vector.load %arg6[%c0_24, %c0_25, %c0_26] : memref<2x1x32xf32, #tpu.memory_space<vmem>>, vector<1x1x32xf32>
    %44 = vector.shape_cast %43 : vector<1x1x32xf32> to vector<1x32xf32>
    %cst_27 = arith.constant dense<0.000000e+00> : vector<16xf32>
    %45 = vector.multi_reduction <add>, %40, %cst_27 [1] : vector<16x32xf32> to vector<16xf32>
    %46 = vector.shape_cast %45 : vector<16xf32> to vector<16x1xf32>
    %cst_28 = arith.constant 3.200000e+01 : f32
    %47 = vector.broadcast %cst_28 : f32 to vector<16x1xf32>
    %48 = arith.divf %46, %47 : vector<16x1xf32>
    %49 = vector.broadcast %48 : vector<16x1xf32> to vector<16x32xf32>
    %50 = arith.subf %40, %49 : vector<16x32xf32>
    %51 = arith.mulf %50, %50 : vector<16x32xf32>
    %cst_29 = arith.constant dense<0.000000e+00> : vector<16xf32>
    %52 = vector.multi_reduction <add>, %51, %cst_29 [1] : vector<16x32xf32> to vector<16xf32>
    %53 = vector.shape_cast %52 : vector<16xf32> to vector<16x1xf32>
    %cst_30 = arith.constant 3.200000e+01 : f32
    %54 = vector.broadcast %cst_30 : f32 to vector<16x1xf32>
    %55 = arith.divf %53, %54 : vector<16x1xf32>
    %56 = vector.broadcast %48 : vector<16x1xf32> to vector<16x32xf32>
    %57 = arith.subf %40, %56 : vector<16x32xf32>
    %cst_31 = arith.constant 9.99999974E-6 : f32
    %58 = vector.broadcast %cst_31 : f32 to vector<16x1xf32>
    %59 = arith.addf %55, %58 : vector<16x1xf32>
    %60 = math.rsqrt %59 : vector<16x1xf32>
    %61 = vector.broadcast %60 : vector<16x1xf32> to vector<16x32xf32>
    %62 = arith.mulf %57, %61 : vector<16x32xf32>
    %63 = vector.broadcast %42 : vector<1x32xf32> to vector<16x32xf32>
    %64 = arith.mulf %62, %63 : vector<16x32xf32>
    %65 = vector.broadcast %44 : vector<1x32xf32> to vector<16x32xf32>
    %66 = arith.addf %64, %65 : vector<16x32xf32>
    %c0_32 = arith.constant 0 : index
    %c0_33 = arith.constant 0 : index
    %c0_34 = arith.constant 0 : index
    %67 = vector.load %arg7[%c0_32, %c0_33, %c0_34] : memref<2x32x512xf32, #tpu.memory_space<vmem>>, vector<1x32x512xf32>
    %68 = vector.shape_cast %67 : vector<1x32x512xf32> to vector<32x512xf32>
    %cst_35 = arith.constant dense<0.000000e+00> : vector<16x512xf32>
    %69 = tpu.matmul %66, %68, %cst_35 {dimension_numbers = #tpu.dot_dimension_numbers<[1], [0], [0], [1], [0, 0, 1, 1], [], []>} : vector<16x32xf32>, vector<32x512xf32>, vector<16x512xf32> -> vector<16x512xf32>
    %c0_36 = arith.constant 0 : index
    %c0_37 = arith.constant 0 : index
    %c0_38 = arith.constant 0 : index
    %70 = vector.load %arg8[%c0_36, %c0_37, %c0_38] : memref<2x1x512xf32, #tpu.memory_space<vmem>>, vector<1x1x512xf32>
    %71 = vector.shape_cast %70 : vector<1x1x512xf32> to vector<1x512xf32>
    %72 = vector.broadcast %71 : vector<1x512xf32> to vector<16x512xf32>
    %73 = arith.addf %69, %72 : vector<16x512xf32>
    %cst_39 = arith.constant 0.000000e+00 : f32
    %74 = vector.broadcast %cst_39 : f32 to vector<16x512xf32>
    %75 = arith.maximumf %73, %74 : vector<16x512xf32>
    %c0_40 = arith.constant 0 : index
    %c0_41 = arith.constant 0 : index
    %c0_42 = arith.constant 0 : index
    %76 = vector.load %arg9[%c0_40, %c0_41, %c0_42] : memref<2x512x32xf32, #tpu.memory_space<vmem>>, vector<1x512x32xf32>
    %77 = vector.shape_cast %76 : vector<1x512x32xf32> to vector<512x32xf32>
    %cst_43 = arith.constant dense<0.000000e+00> : vector<16x32xf32>
    %78 = tpu.matmul %75, %77, %cst_43 {dimension_numbers = #tpu.dot_dimension_numbers<[1], [0], [0], [1], [0, 0, 1, 1], [], []>} : vector<16x512xf32>, vector<512x32xf32>, vector<16x32xf32> -> vector<16x32xf32>
    %c0_44 = arith.constant 0 : index
    %c0_45 = arith.constant 0 : index
    %c0_46 = arith.constant 0 : index
    %79 = vector.load %arg10[%c0_44, %c0_45, %c0_46] : memref<2x1x32xf32, #tpu.memory_space<vmem>>, vector<1x1x32xf32>
    %80 = vector.shape_cast %79 : vector<1x1x32xf32> to vector<1x32xf32>
    %81 = vector.broadcast %80 : vector<1x32xf32> to vector<16x32xf32>
    %82 = arith.addf %78, %81 : vector<16x32xf32>
    %83 = arith.addf %66, %82 : vector<16x32xf32>
    %c0_47 = arith.constant 0 : index
    %c0_48 = arith.constant 0 : index
    %c0_49 = arith.constant 0 : index
    %84 = vector.load %arg11[%c0_47, %c0_48, %c0_49] : memref<2x1x32xf32, #tpu.memory_space<vmem>>, vector<1x1x32xf32>
    %85 = vector.shape_cast %84 : vector<1x1x32xf32> to vector<1x32xf32>
    %c0_50 = arith.constant 0 : index
    %c0_51 = arith.constant 0 : index
    %c0_52 = arith.constant 0 : index
    %86 = vector.load %arg12[%c0_50, %c0_51, %c0_52] : memref<2x1x32xf32, #tpu.memory_space<vmem>>, vector<1x1x32xf32>
    %87 = vector.shape_cast %86 : vector<1x1x32xf32> to vector<1x32xf32>
    %cst_53 = arith.constant dense<0.000000e+00> : vector<16xf32>
    %88 = vector.multi_reduction <add>, %83, %cst_53 [1] : vector<16x32xf32> to vector<16xf32>
    %89 = vector.shape_cast %88 : vector<16xf32> to vector<16x1xf32>
    %cst_54 = arith.constant 3.200000e+01 : f32
    %90 = vector.broadcast %cst_54 : f32 to vector<16x1xf32>
    %91 = arith.divf %89, %90 : vector<16x1xf32>
    %92 = vector.broadcast %91 : vector<16x1xf32> to vector<16x32xf32>
    %93 = arith.subf %83, %92 : vector<16x32xf32>
    %94 = arith.mulf %93, %93 : vector<16x32xf32>
    %cst_55 = arith.constant dense<0.000000e+00> : vector<16xf32>
    %95 = vector.multi_reduction <add>, %94, %cst_55 [1] : vector<16x32xf32> to vector<16xf32>
    %96 = vector.shape_cast %95 : vector<16xf32> to vector<16x1xf32>
    %cst_56 = arith.constant 3.200000e+01 : f32
    %97 = vector.broadcast %cst_56 : f32 to vector<16x1xf32>
    %98 = arith.divf %96, %97 : vector<16x1xf32>
    %99 = vector.broadcast %91 : vector<16x1xf32> to vector<16x32xf32>
    %100 = arith.subf %83, %99 : vector<16x32xf32>
    %cst_57 = arith.constant 9.99999974E-6 : f32
    %101 = vector.broadcast %cst_57 : f32 to vector<16x1xf32>
    %102 = arith.addf %98, %101 : vector<16x1xf32>
    %103 = math.rsqrt %102 : vector<16x1xf32>
    %104 = vector.broadcast %103 : vector<16x1xf32> to vector<16x32xf32>
    %105 = arith.mulf %100, %104 : vector<16x32xf32>
    %106 = vector.broadcast %85 : vector<1x32xf32> to vector<16x32xf32>
    %107 = arith.mulf %105, %106 : vector<16x32xf32>
    %108 = vector.broadcast %87 : vector<1x32xf32> to vector<16x32xf32>
    %109 = arith.addf %107, %108 : vector<16x32xf32>
    %c1 = arith.constant 1 : index
    %c0_58 = arith.constant 0 : index
    %c0_59 = arith.constant 0 : index
    %110 = vector.load %arg1[%c1, %c0_58, %c0_59] : memref<2x32x96xf32, #tpu.memory_space<vmem>>, vector<1x32x96xf32>
    %111 = vector.shape_cast %110 : vector<1x32x96xf32> to vector<32x96xf32>
    %cst_60 = arith.constant dense<0.000000e+00> : vector<16x96xf32>
    %112 = tpu.matmul %109, %111, %cst_60 {dimension_numbers = #tpu.dot_dimension_numbers<[1], [0], [0], [1], [0, 0, 1, 1], [], []>} : vector<16x32xf32>, vector<32x96xf32>, vector<16x96xf32> -> vector<16x96xf32>
    %c1_61 = arith.constant 1 : index
    %c0_62 = arith.constant 0 : index
    %c0_63 = arith.constant 0 : index
    %113 = vector.load %arg2[%c1_61, %c0_62, %c0_63] : memref<2x1x96xf32, #tpu.memory_space<vmem>>, vector<1x1x96xf32>
    %114 = vector.shape_cast %113 : vector<1x1x96xf32> to vector<1x96xf32>
    %115 = vector.broadcast %114 : vector<1x96xf32> to vector<16x96xf32>
    %116 = arith.addf %112, %115 : vector<16x96xf32>
    %117 = vector.extract_strided_slice %116 {offsets = [0, 0], sizes = [16, 32], strides = [1, 1]} : vector<16x96xf32> to vector<16x32xf32>
    %cst_64 = arith.constant 0.176776692 : f32
    %118 = vector.broadcast %cst_64 : f32 to vector<16x32xf32>
    %119 = arith.mulf %117, %118 : vector<16x32xf32>
    %120 = vector.shape_cast %119 : vector<16x32xf32> to vector<2x8x32xf32>
    %121 = vector.extract_strided_slice %116 {offsets = [0, 32], sizes = [16, 32], strides = [1, 1]} : vector<16x96xf32> to vector<16x32xf32>
    %122 = vector.shape_cast %121 : vector<16x32xf32> to vector<2x8x32xf32>
    %123 = vector.extract_strided_slice %116 {offsets = [0, 64], sizes = [16, 32], strides = [1, 1]} : vector<16x96xf32> to vector<16x32xf32>
    %124 = vector.shape_cast %123 : vector<16x32xf32> to vector<2x8x32xf32>
    "tpu.trace_start"() <{level = 10 : i32, message = "bqe,bke->bqk"}> : () -> ()
    %cst_65 = arith.constant dense<0.000000e+00> : vector<2x8x8xf32>
    %125 = tpu.matmul %120, %122, %cst_65 {dimension_numbers = #tpu.dot_dimension_numbers<[2], [2], [1], [1], [0, 0, 0, 1, 1, 1], [0], [0]>} : vector<2x8x32xf32>, vector<2x8x32xf32>, vector<2x8x8xf32> -> vector<2x8x8xf32>
    "tpu.trace_stop"() : () -> ()
    %cst_66 = arith.constant dense<0xFF800000> : vector<2x8xf32>
    %126 = vector.multi_reduction <maximumf>, %125, %cst_66 [2] : vector<2x8x8xf32> to vector<2x8xf32>
    %127 = vector.shape_cast %126 : vector<2x8xf32> to vector<2x8x1xf32>
    %128 = vector.broadcast %127 : vector<2x8x1xf32> to vector<2x8x8xf32>
    %129 = arith.subf %125, %128 : vector<2x8x8xf32>
    %130 = math.exp %129 : vector<2x8x8xf32>
    %cst_67 = arith.constant dense<0.000000e+00> : vector<2x8xf32>
    %131 = vector.multi_reduction <add>, %130, %cst_67 [2] : vector<2x8x8xf32> to vector<2x8xf32>
    %132 = vector.shape_cast %131 : vector<2x8xf32> to vector<2x8x1xf32>
    %133 = tpu.reciprocal %132 {approx = true} : vector<2x8x1xf32> -> vector<2x8x1xf32>
    %134 = vector.broadcast %133 : vector<2x8x1xf32> to vector<2x8x8xf32>
    %135 = arith.mulf %130, %134 : vector<2x8x8xf32>
    "tpu.trace_start"() <{level = 10 : i32, message = "bqk,bke->bqe"}> : () -> ()
    %cst_68 = arith.constant dense<0.000000e+00> : vector<2x8x32xf32>
    %136 = tpu.matmul %135, %124, %cst_68 {dimension_numbers = #tpu.dot_dimension_numbers<[2], [1], [1], [2], [0, 0, 0, 1, 1, 2], [0], [0]>} : vector<2x8x8xf32>, vector<2x8x32xf32>, vector<2x8x32xf32> -> vector<2x8x32xf32>
    "tpu.trace_stop"() : () -> ()
    %137 = vector.shape_cast %136 : vector<2x8x32xf32> to vector<16x32xf32>
    %c1_69 = arith.constant 1 : index
    %c0_70 = arith.constant 0 : index
    %c0_71 = arith.constant 0 : index
    %138 = vector.load %arg3[%c1_69, %c0_70, %c0_71] : memref<2x32x32xf32, #tpu.memory_space<vmem>>, vector<1x32x32xf32>
    %139 = vector.shape_cast %138 : vector<1x32x32xf32> to vector<32x32xf32>
    %cst_72 = arith.constant dense<0.000000e+00> : vector<16x32xf32>
    %140 = tpu.matmul %137, %139, %cst_72 {dimension_numbers = #tpu.dot_dimension_numbers<[1], [0], [0], [1], [0, 0, 1, 1], [], []>} : vector<16x32xf32>, vector<32x32xf32>, vector<16x32xf32> -> vector<16x32xf32>
    %c1_73 = arith.constant 1 : index
    %c0_74 = arith.constant 0 : index
    %c0_75 = arith.constant 0 : index
    %141 = vector.load %arg4[%c1_73, %c0_74, %c0_75] : memref<2x1x32xf32, #tpu.memory_space<vmem>>, vector<1x1x32xf32>
    %142 = vector.shape_cast %141 : vector<1x1x32xf32> to vector<1x32xf32>
    %143 = vector.broadcast %142 : vector<1x32xf32> to vector<16x32xf32>
    %144 = arith.addf %140, %143 : vector<16x32xf32>
    %145 = arith.addf %109, %144 : vector<16x32xf32>
    %c1_76 = arith.constant 1 : index
    %c0_77 = arith.constant 0 : index
    %c0_78 = arith.constant 0 : index
    %146 = vector.load %arg5[%c1_76, %c0_77, %c0_78] : memref<2x1x32xf32, #tpu.memory_space<vmem>>, vector<1x1x32xf32>
    %147 = vector.shape_cast %146 : vector<1x1x32xf32> to vector<1x32xf32>
    %c1_79 = arith.constant 1 : index
    %c0_80 = arith.constant 0 : index
    %c0_81 = arith.constant 0 : index
    %148 = vector.load %arg6[%c1_79, %c0_80, %c0_81] : memref<2x1x32xf32, #tpu.memory_space<vmem>>, vector<1x1x32xf32>
    %149 = vector.shape_cast %148 : vector<1x1x32xf32> to vector<1x32xf32>
    %cst_82 = arith.constant dense<0.000000e+00> : vector<16xf32>
    %150 = vector.multi_reduction <add>, %145, %cst_82 [1] : vector<16x32xf32> to vector<16xf32>
    %151 = vector.shape_cast %150 : vector<16xf32> to vector<16x1xf32>
    %cst_83 = arith.constant 3.200000e+01 : f32
    %152 = vector.broadcast %cst_83 : f32 to vector<16x1xf32>
    %153 = arith.divf %151, %152 : vector<16x1xf32>
    %154 = vector.broadcast %153 : vector<16x1xf32> to vector<16x32xf32>
    %155 = arith.subf %145, %154 : vector<16x32xf32>
    %156 = arith.mulf %155, %155 : vector<16x32xf32>
    %cst_84 = arith.constant dense<0.000000e+00> : vector<16xf32>
    %157 = vector.multi_reduction <add>, %156, %cst_84 [1] : vector<16x32xf32> to vector<16xf32>
    %158 = vector.shape_cast %157 : vector<16xf32> to vector<16x1xf32>
    %cst_85 = arith.constant 3.200000e+01 : f32
    %159 = vector.broadcast %cst_85 : f32 to vector<16x1xf32>
    %160 = arith.divf %158, %159 : vector<16x1xf32>
    %161 = vector.broadcast %153 : vector<16x1xf32> to vector<16x32xf32>
    %162 = arith.subf %145, %161 : vector<16x32xf32>
    %cst_86 = arith.constant 9.99999974E-6 : f32
    %163 = vector.broadcast %cst_86 : f32 to vector<16x1xf32>
    %164 = arith.addf %160, %163 : vector<16x1xf32>
    %165 = math.rsqrt %164 : vector<16x1xf32>
    %166 = vector.broadcast %165 : vector<16x1xf32> to vector<16x32xf32>
    %167 = arith.mulf %162, %166 : vector<16x32xf32>
    %168 = vector.broadcast %147 : vector<1x32xf32> to vector<16x32xf32>
    %169 = arith.mulf %167, %168 : vector<16x32xf32>
    %170 = vector.broadcast %149 : vector<1x32xf32> to vector<16x32xf32>
    %171 = arith.addf %169, %170 : vector<16x32xf32>
    %c1_87 = arith.constant 1 : index
    %c0_88 = arith.constant 0 : index
    %c0_89 = arith.constant 0 : index
    %172 = vector.load %arg7[%c1_87, %c0_88, %c0_89] : memref<2x32x512xf32, #tpu.memory_space<vmem>>, vector<1x32x512xf32>
    %173 = vector.shape_cast %172 : vector<1x32x512xf32> to vector<32x512xf32>
    %cst_90 = arith.constant dense<0.000000e+00> : vector<16x512xf32>
    %174 = tpu.matmul %171, %173, %cst_90 {dimension_numbers = #tpu.dot_dimension_numbers<[1], [0], [0], [1], [0, 0, 1, 1], [], []>} : vector<16x32xf32>, vector<32x512xf32>, vector<16x512xf32> -> vector<16x512xf32>
    %c1_91 = arith.constant 1 : index
    %c0_92 = arith.constant 0 : index
    %c0_93 = arith.constant 0 : index
    %175 = vector.load %arg8[%c1_91, %c0_92, %c0_93] : memref<2x1x512xf32, #tpu.memory_space<vmem>>, vector<1x1x512xf32>
    %176 = vector.shape_cast %175 : vector<1x1x512xf32> to vector<1x512xf32>
    %177 = vector.broadcast %176 : vector<1x512xf32> to vector<16x512xf32>
    %178 = arith.addf %174, %177 : vector<16x512xf32>
    %cst_94 = arith.constant 0.000000e+00 : f32
    %179 = vector.broadcast %cst_94 : f32 to vector<16x512xf32>
    %180 = arith.maximumf %178, %179 : vector<16x512xf32>
    %c1_95 = arith.constant 1 : index
    %c0_96 = arith.constant 0 : index
    %c0_97 = arith.constant 0 : index
    %181 = vector.load %arg9[%c1_95, %c0_96, %c0_97] : memref<2x512x32xf32, #tpu.memory_space<vmem>>, vector<1x512x32xf32>
    %182 = vector.shape_cast %181 : vector<1x512x32xf32> to vector<512x32xf32>
    %cst_98 = arith.constant dense<0.000000e+00> : vector<16x32xf32>
    %183 = tpu.matmul %180, %182, %cst_98 {dimension_numbers = #tpu.dot_dimension_numbers<[1], [0], [0], [1], [0, 0, 1, 1], [], []>} : vector<16x512xf32>, vector<512x32xf32>, vector<16x32xf32> -> vector<16x32xf32>
    %c1_99 = arith.constant 1 : index
    %c0_100 = arith.constant 0 : index
    %c0_101 = arith.constant 0 : index
    %184 = vector.load %arg10[%c1_99, %c0_100, %c0_101] : memref<2x1x32xf32, #tpu.memory_space<vmem>>, vector<1x1x32xf32>
    %185 = vector.shape_cast %184 : vector<1x1x32xf32> to vector<1x32xf32>
    %186 = vector.broadcast %185 : vector<1x32xf32> to vector<16x32xf32>
    %187 = arith.addf %183, %186 : vector<16x32xf32>
    %188 = arith.addf %171, %187 : vector<16x32xf32>
    %c1_102 = arith.constant 1 : index
    %c0_103 = arith.constant 0 : index
    %c0_104 = arith.constant 0 : index
    %189 = vector.load %arg11[%c1_102, %c0_103, %c0_104] : memref<2x1x32xf32, #tpu.memory_space<vmem>>, vector<1x1x32xf32>
    %190 = vector.shape_cast %189 : vector<1x1x32xf32> to vector<1x32xf32>
    %c1_105 = arith.constant 1 : index
    %c0_106 = arith.constant 0 : index
    %c0_107 = arith.constant 0 : index
    %191 = vector.load %arg12[%c1_105, %c0_106, %c0_107] : memref<2x1x32xf32, #tpu.memory_space<vmem>>, vector<1x1x32xf32>
    %192 = vector.shape_cast %191 : vector<1x1x32xf32> to vector<1x32xf32>
    %cst_108 = arith.constant dense<0.000000e+00> : vector<16xf32>
    %193 = vector.multi_reduction <add>, %188, %cst_108 [1] : vector<16x32xf32> to vector<16xf32>
    %194 = vector.shape_cast %193 : vector<16xf32> to vector<16x1xf32>
    %cst_109 = arith.constant 3.200000e+01 : f32
    %195 = vector.broadcast %cst_109 : f32 to vector<16x1xf32>
    %196 = arith.divf %194, %195 : vector<16x1xf32>
    %197 = vector.broadcast %196 : vector<16x1xf32> to vector<16x32xf32>
    %198 = arith.subf %188, %197 : vector<16x32xf32>
    %199 = arith.mulf %198, %198 : vector<16x32xf32>
    %cst_110 = arith.constant dense<0.000000e+00> : vector<16xf32>
    %200 = vector.multi_reduction <add>, %199, %cst_110 [1] : vector<16x32xf32> to vector<16xf32>
    %201 = vector.shape_cast %200 : vector<16xf32> to vector<16x1xf32>
    %cst_111 = arith.constant 3.200000e+01 : f32
    %202 = vector.broadcast %cst_111 : f32 to vector<16x1xf32>
    %203 = arith.divf %201, %202 : vector<16x1xf32>
    %204 = vector.broadcast %196 : vector<16x1xf32> to vector<16x32xf32>
    %205 = arith.subf %188, %204 : vector<16x32xf32>
    %cst_112 = arith.constant 9.99999974E-6 : f32
    %206 = vector.broadcast %cst_112 : f32 to vector<16x1xf32>
    %207 = arith.addf %203, %206 : vector<16x1xf32>
    %208 = math.rsqrt %207 : vector<16x1xf32>
    %209 = vector.broadcast %208 : vector<16x1xf32> to vector<16x32xf32>
    %210 = arith.mulf %205, %209 : vector<16x32xf32>
    %211 = vector.broadcast %190 : vector<1x32xf32> to vector<16x32xf32>
    %212 = arith.mulf %210, %211 : vector<16x32xf32>
    %213 = vector.broadcast %192 : vector<1x32xf32> to vector<16x32xf32>
    %214 = arith.addf %212, %213 : vector<16x32xf32>
    %215 = vector.shape_cast %214 : vector<16x32xf32> to vector<2x8x32xf32>
    %216 = tpu.transpose %215, [1, 0, 2] : vector<2x8x32xf32> -> vector<8x2x32xf32>
    %c0_113 = arith.constant 0 : index
    %c0_114 = arith.constant 0 : index
    %c0_115 = arith.constant 0 : index
    %217 = vector.load %arg13[%c0_113, %c0_114, %c0_115] : memref<8x2x32xf32, #tpu.memory_space<vmem>>, vector<8x2x32xf32>
    tpu.vector_store %arg13[%c0_113, %c0_114, %c0_115], %216 {strides = array<i32>} : memref<8x2x32xf32, #tpu.memory_space<vmem>>, vector<8x2x32xf32>,
    return
  }
}

</mosaic_0001>

<llo_original>
// kernel: tpu_custom_call.1
$region0: #{tpu_custom_call.1}
  #allocation0 [shape = 'u32[]', space=smem, size = 0x4, offset = 0x4, fixed_abs, tag = 'smem constant byte address 0x4 - core index']
  #allocation1 [shape = 'u32[144,128]{1,0:T(1,128)}', space=vmem, size = 0x12000, scoped, tag = 'internal scratch']
  %s0 = inlined_call_operand.vmem [shape: f32[8,2,32], index: 0, kind: input, shape index: {}]
  %s1 = inlined_call_operand.vmem [shape: f32[2,32,96], index: 1, kind: input, shape index: {}]
  %s2 = inlined_call_operand.vmem [shape: f32[2,1,96], index: 2, kind: input, shape index: {}]
  %s3 = inlined_call_operand.vmem [shape: f32[2,32,32], index: 3, kind: input, shape index: {}]
  %s4 = inlined_call_operand.vmem [shape: f32[2,1,32], index: 4, kind: input, shape index: {}]
  %s5 = inlined_call_operand.vmem [shape: f32[2,1,32], index: 5, kind: input, shape index: {}]
  %s6 = inlined_call_operand.vmem [shape: f32[2,1,32], index: 6, kind: input, shape index: {}]
  %s7 = inlined_call_operand.vmem [shape: f32[2,32,512], index: 7, kind: input, shape index: {}]
  %s8 = inlined_call_operand.vmem [shape: f32[2,1,512], index: 8, kind: input, shape index: {}]
  %s9 = inlined_call_operand.vmem [shape: f32[2,512,32], index: 9, kind: input, shape index: {}]
  %s10 = inlined_call_operand.vmem [shape: f32[2,1,32], index: 10, kind: input, shape index: {}]
  %s11 = inlined_call_operand.vmem [shape: f32[2,1,32], index: 11, kind: input, shape index: {}]
  %s12 = inlined_call_operand.vmem [shape: f32[2,1,32], index: 12, kind: input, shape index: {}]
  %s13 = inlined_call_operand.hbm [shape: f32[8,2,32], index: 13, kind: output, shape index: {}]
  %s14 = sld [smem:[#allocation0]]
  $region62: #{tpu_custom_call.1} parent=0
    _
  %s16 = ssub.s32 1, %s14
  %s17 = scalar_select 0, %s16, %s14
  $region1: #{tpu_custom_call.1} parent=0
    #allocation2 [shape = 'u8[8192]{0}', space=vmem, size = 0x2000, scoped, tag = 'output window, operand 0, single buffered']
    #allocation3 [shape = 's32[1]{0}', space=sflag, size = 0x4, scoped, tag = 'scoped memory for tpu_custom_call.1']
    %18 = vsyncpa [#allocation3], 0
    // Predicated region
    $region2: #{tpu_custom_call.1} parent=1 // pred_check
      _
    $region3: #{tpu_custom_call.1} parent=1 // pred_check_branch
      %20 = sbr.rel (0) target = $region5
    $region4: #{tpu_custom_call.1} parent=1 // pred_region
      _
    $region5: #{tpu_custom_call.1} parent=1 // pred_fallthru
      _
    // Predicated region
    $region6: #{tpu_custom_call.1} parent=1 // pred_check
      _
    $region7: #{tpu_custom_call.1} parent=1 // pred_check_branch
      %22 = sbr.rel (0) target = $region9
    $region8: #{tpu_custom_call.1} parent=1 // pred_region
      _
    $region9: #{tpu_custom_call.1} parent=1 // pred_fallthru
      _
    // Predicated region
    $region10: #{tpu_custom_call.1} parent=1 // pred_check
      _
    $region11: #{tpu_custom_call.1} parent=1 // pred_check_branch
      %24 = sbr.rel (0) target = $region13
    $region12: #{tpu_custom_call.1} parent=1 // pred_region
      _
    $region13: #{tpu_custom_call.1} parent=1 // pred_fallthru
      _
    // Predicated region
    $region14: #{tpu_custom_call.1} parent=1 // pred_check
      _
    $region15: #{tpu_custom_call.1} parent=1 // pred_check_branch
      %26 = sbr.rel (0) target = $region17
    $region16: #{tpu_custom_call.1} parent=1 // pred_region
      _
    $region17: #{tpu_custom_call.1} parent=1 // pred_fallthru
      _
    // Predicated region
    $region18: #{tpu_custom_call.1} parent=1 // pred_check
      _
    $region19: #{tpu_custom_call.1} parent=1 // pred_check_branch
      %28 = sbr.rel (0) target = $region21
    $region20: #{tpu_custom_call.1} parent=1 // pred_region
      _
    $region21: #{tpu_custom_call.1} parent=1 // pred_fallthru
      _
    // Predicated region
    $region22: #{tpu_custom_call.1} parent=1 // pred_check
      _
    $region23: #{tpu_custom_call.1} parent=1 // pred_check_branch
      %30 = sbr.rel (0) target = $region25
    $region24: #{tpu_custom_call.1} parent=1 // pred_region
      _
    $region25: #{tpu_custom_call.1} parent=1 // pred_fallthru
      _
    // Predicated region
    $region26: #{tpu_custom_call.1} parent=1 // pred_check
      _
    $region27: #{tpu_custom_call.1} parent=1 // pred_check_branch
      %32 = sbr.rel (0) target = $region29
    $region28: #{tpu_custom_call.1} parent=1 // pred_region
      _
    $region29: #{tpu_custom_call.1} parent=1 // pred_fallthru
      _
    // Predicated region
    $region30: #{tpu_custom_call.1} parent=1 // pred_check
      _
    $region31: #{tpu_custom_call.1} parent=1 // pred_check_branch
      %34 = sbr.rel (0) target = $region33
    $region32: #{tpu_custom_call.1} parent=1 // pred_region
      _
    $region33: #{tpu_custom_call.1} parent=1 // pred_fallthru
      _
    // Predicated region
    $region34: #{tpu_custom_call.1} parent=1 // pred_check
      _
    $region35: #{tpu_custom_call.1} parent=1 // pred_check_branch
      %36 = sbr.rel (0) target = $region37
    $region36: #{tpu_custom_call.1} parent=1 // pred_region
      _
    $region37: #{tpu_custom_call.1} parent=1 // pred_fallthru
      _
    // Predicated region
    $region38: #{tpu_custom_call.1} parent=1 // pred_check
      _
    $region39: #{tpu_custom_call.1} parent=1 // pred_check_branch
      %38 = sbr.rel (0) target = $region41
    $region40: #{tpu_custom_call.1} parent=1 // pred_region
      _
    $region41: #{tpu_custom_call.1} parent=1 // pred_fallthru
      _
    // Predicated region
    $region42: #{tpu_custom_call.1} parent=1 // pred_check
      _
    $region43: #{tpu_custom_call.1} parent=1 // pred_check_branch
      %40 = sbr.rel (0) target = $region45
    $region44: #{tpu_custom_call.1} parent=1 // pred_region
      _
    $region45: #{tpu_custom_call.1} parent=1 // pred_fallthru
      _
    // Predicated region
    $region46: #{tpu_custom_call.1} parent=1 // pred_check
      _
    $region47: #{tpu_custom_call.1} parent=1 // pred_check_branch
      %42 = sbr.rel (0) target = $region49
    $region48: #{tpu_custom_call.1} parent=1 // pred_region
      _
    $region49: #{tpu_custom_call.1} parent=1 // pred_fallthru
      _
    // Predicated region
    $region50: #{tpu_custom_call.1} parent=1 // pred_check
      _
    $region51: #{tpu_custom_call.1} parent=1 // pred_check_branch
      %44 = sbr.rel (0) target = $region53
    $region52: #{tpu_custom_call.1} parent=1 // pred_region
      _
    $region53: #{tpu_custom_call.1} parent=1 // pred_fallthru
      _
    %v45 = vld [vmem:[%s0] sm:$0x3]
    %v46 = vld [vmem:[%s0 + $0x2] sm:$0x3]
    %v47 = vld [vmem:[%s0 + $0x4] sm:$0x3]
    %v48 = vld [vmem:[%s0 + $0x6] sm:$0x3]
    %v49 = vld [vmem:[%s0 + $0x8] sm:$0x3]
    %v50 = vld [vmem:[%s0 + $0xa] sm:$0x3]
    %v51 = vld [vmem:[%s0 + $0xc] sm:$0x3]
    %v52 = vld [vmem:[%s0 + $0xe] sm:$0x3]
    %v53 = vmul.f32 %v45, 5.656854
    %v54 = vmul.f32 %v46, 5.656854
    %v55 = vmul.f32 %v47, 5.656854
    %v56 = vmul.f32 %v48, 5.656854
    %v57 = vmul.f32 %v49, 5.656854
    %v58 = vmul.f32 %v50, 5.656854
    %v59 = vmul.f32 %v51, 5.656854
    %v60 = vmul.f32 %v52, 5.656854
    %v61 = vcombine.low %v53, %v55
    %v63 = vunpack.c.l.s4 1983009808
    %v64 = vunpack.c.0.s8 %v63
    %v65 = vlaneseq
    %v66 = vshrl.u32 %v65, 7
    %v67 = vsub.s32 %v64, %v66
    %v68 = vrot.slane %v61, %v67
    %v69 = vcombine.low %v54, %v56
    %v71 = vunpack.c.l.s4 1983009808
    %v72 = vunpack.c.0.s8 %v71
    %v73 = vlaneseq
    %v74 = vshrl.u32 %v73, 7
    %v75 = vsub.s32 %v72, %v74
    %v76 = vrot.slane %v69, %v75
    %v77 = vcombine.low %v57, %v59
    %v79 = vunpack.c.l.s4 1983009808
    %v80 = vunpack.c.0.s8 %v79
    %v81 = vlaneseq
    %v82 = vshrl.u32 %v81, 7
    %v83 = vsub.s32 %v80, %v82
    %v84 = vrot.slane %v77, %v83
    %v85 = vcombine.low %v58, %v60
    %v87 = vunpack.c.l.s4 1983009808
    %v88 = vunpack.c.0.s8 %v87
    %v89 = vlaneseq
    %v90 = vshrl.u32 %v89, 7
    %v91 = vsub.s32 %v88, %v90
    %v92 = vrot.slane %v85, %v91
    %v93 = vcombine.low %v68, %v76
    %v95 = vunpack.c.l.s4 1934713408
    %v96 = vunpack.c.0.s8 %v95
    %v97 = vlaneseq
    %v98 = vshrl.u32 %v97, 7
    %v99 = vsub.s32 %v96, %v98
    %v100 = vrot.slane %v93, %v99
    %v101 = vcombine.low %v84, %v92
    %v103 = vunpack.c.l.s4 1934713408
    %v104 = vunpack.c.0.s8 %v103
    %v105 = vlaneseq
    %v106 = vshrl.u32 %v105, 7
    %v107 = vsub.s32 %v104, %v106
    %v108 = vrot.slane %v101, %v107
    %v109 = vcombine.low %v100, %v108
    %v110 = vcombine.high %v100, %v108
    %v111 = vld [vmem:[%s1] sm:$0xff]
    %v112 = vld [vmem:[%s1 + $0x8] sm:$0xff]
    %v113 = vld [vmem:[%s1 + $0x10] sm:$0xff]
    %v114 = vld [vmem:[%s1 + $0x18] sm:$0xff]
    %v115 = vld [vmem:[%s2] sm:$0x1]
    %v117 = vlaneseq
    %v118 = vshrl.u32 %v117, 7
    %v119 = vsub.s32 0, %v118
    %v120 = vrot.slane %v115, %v119
    %vm122 = vcmask 261120
    %v124 = vsel %vm122, %v109, 0
    %v127 = vsel %vm122, %v110, 0
    %129 = vmatprep.subr.mxu0 0.0
    %130 = vmatpush1.msra.mxu0 0.0
    %131 = vmatprep.subr.mxu0 0.0
    %132 = vmatpush1.msra.mxu0 0.0
    %133 = vmatprep.subr.mxu0 0.0
    %134 = vmatpush1.msra.mxu0 0.0
    %135 = vmatprep.subr.mxu0 0.0
    %136 = vmatpush1.msra.mxu0 0.0
    %137 = vmatprep.subr.mxu0 0.0
    %138 = vmatpush1.msra.mxu0 0.0
    %139 = vmatprep.subr.mxu0 0.0
    %140 = vmatpush1.msra.mxu0 0.0
    %141 = vmatprep.subr.mxu0 0.0
    %142 = vmatpush1.msra.mxu0 0.0
    %143 = vmatprep.subr.mxu0 0.0
    %144 = vmatpush1.msra.mxu0 0.0
    %145 = vmatprep.subr.mxu0 0.0
    %146 = vmatpush1.msra.mxu0 0.0
    %147 = vmatprep.subr.mxu0 0.0
    %148 = vmatpush1.msra.mxu0 0.0
    %149 = vmatprep.subr.mxu0 0.0
    %150 = vmatpush1.msra.mxu0 0.0
    %151 = vmatprep.subr.mxu0 0.0
    %152 = vmatpush1.msra.mxu0 0.0
    %153 = vmatprep.subr.mxu0 0.0
    %154 = vmatpush1.msra.mxu0 %v114
    %155 = vmatprep.subr.mxu0 0.0
    %156 = vmatpush1.msra.mxu0 %v113
    %157 = vmatprep.subr.mxu0 0.0
    %158 = vmatpush1.msra.mxu0 %v112
    %159 = vmatprep.subr.mxu0 0.0
    %160 = vmatpush1.msra.mxu0 %v111
    %161 = vmatprep.subr.mxu0 0.0
    %162 = vmatpush2.msra.mxu0 0.0
    %163 = vmatprep.subr.mxu0 0.0
    %164 = vmatpush2.msra.mxu0 0.0
    %165 = vmatprep.subr.mxu0 0.0
    %166 = vmatpush2.msra.mxu0 0.0
    %167 = vmatprep.subr.mxu0 0.0
    %168 = vmatpush2.msra.mxu0 0.0
    %169 = vmatprep.subr.mxu0 0.0
    %170 = vmatpush2.msra.mxu0 0.0
    %171 = vmatprep.subr.mxu0 0.0
    %172 = vmatpush2.msra.mxu0 0.0
    %173 = vmatprep.subr.mxu0 0.0
    %174 = vmatpush2.msra.mxu0 0.0
    %175 = vmatprep.subr.mxu0 0.0
    %176 = vmatpush2.msra.mxu0 0.0
    %177 = vmatprep.subr.mxu0 0.0
    %178 = vmatpush2.msra.mxu0 0.0
    %179 = vmatprep.subr.mxu0 0.0
    %180 = vmatpush2.msra.mxu0 0.0
    %181 = vmatprep.subr.mxu0 0.0
    %182 = vmatpush2.msra.mxu0 0.0
    %183 = vmatprep.subr.mxu0 0.0
    %184 = vmatpush2.msra.mxu0 0.0
    %185 = vmatprep.subr.mxu0 0.0
    %186 = vmatpush2.msra.mxu0 0.0
    %187 = vmatprep.subr.mxu0 0.0
    %188 = vmatpush2.msra.mxu0 0.0
    %189 = vmatprep.subr.mxu0 0.0
    %190 = vmatpush2.msra.mxu0 0.0
    %191 = vmatprep.subr.mxu0 0.0
    %192 = vmatpush2.msra.mxu0 0.0
    %193 = vmatprep.mubr.f32.mxu0 0.0
    %194 = vmatmul.mubr.f32.gmra.mxu0 %v124
    %v195 = vpop.f32.mrf.mxu0
    %v196 = vadd.f32 %v120, %v195
    %v197 = vpop.f32.mrf.mxu0
    %198 = vmatprep.mubr.f32.mxu0 0.0
    %199 = vmatmul.mubr.f32.gmra.mxu0 %v127
    %v200 = vpop.f32.mrf.mxu0
    %v201 = vadd.f32 %v120, %v200
    %v202 = vpop.f32.mrf.mxu0
    %203 = vdwg.mxu0
    %v204 = vmul.f32 %v196, 0.17677669
    %v205 = vmul.f32 %v201, 0.17677669
    %207 = vrot.lane.b32.xlu0 %v196, 96
    %v208 = vpop.permute.xlu0 %207
    %v210 = vsel %vm122, %v204, 0
    %v212 = vsel %vm122, %v208, 0
    %214 = vmatprep.subr.mxu0 0.0
    %215 = vmatpush1.xpose.msra.mxu0 0.0
    %216 = vmatprep.subr.mxu0 0.0
    %217 = vmatpush1.xpose.msra.mxu0 0.0
    %218 = vmatprep.subr.mxu0 0.0
    %219 = vmatpush1.xpose.msra.mxu0 0.0
    %220 = vmatprep.subr.mxu0 0.0
    %221 = vmatpush1.xpose.msra.mxu0 0.0
    %222 = vmatprep.subr.mxu0 0.0
    %223 = vmatpush1.xpose.msra.mxu0 0.0
    %224 = vmatprep.subr.mxu0 0.0
    %225 = vmatpush1.xpose.msra.mxu0 0.0
    %226 = vmatprep.subr.mxu0 0.0
    %227 = vmatpush1.xpose.msra.mxu0 0.0
    %228 = vmatprep.subr.mxu0 0.0
    %229 = vmatpush1.xpose.msra.mxu0 0.0
    %230 = vmatprep.subr.mxu0 0.0
    %231 = vmatpush1.xpose.msra.mxu0 0.0
    %232 = vmatprep.subr.mxu0 0.0
    %233 = vmatpush1.xpose.msra.mxu0 0.0
    %234 = vmatprep.subr.mxu0 0.0
    %235 = vmatpush1.xpose.msra.mxu0 0.0
    %236 = vmatprep.subr.mxu0 0.0
    %237 = vmatpush1.xpose.msra.mxu0 0.0
    %238 = vmatprep.subr.mxu0 0.0
    %239 = vmatpush1.xpose.msra.mxu0 0.0
    %240 = vmatprep.subr.mxu0 0.0
    %241 = vmatpush1.xpose.msra.mxu0 0.0
    %242 = vmatprep.subr.mxu0 0.0
    %243 = vmatpush1.xpose.msra.mxu0 0.0
    %244 = vmatprep.subr.mxu0 0.0
    %245 = vmatpush1.xpose.msra.mxu0 %v212
    %246 = vmatprep.subr.mxu0 0.0
    %247 = vmatpush2.xpose.msra.mxu0 0.0
    %248 = vmatprep.subr.mxu0 0.0
    %249 = vmatpush2.xpose.msra.mxu0 0.0
    %250 = vmatprep.subr.mxu0 0.0
    %251 = vmatpush2.xpose.msra.mxu0 0.0
    %252 = vmatprep.subr.mxu0 0.0
    %253 = vmatpush2.xpose.msra.mxu0 0.0
    %254 = vmatprep.subr.mxu0 0.0
    %255 = vmatpush2.xpose.msra.mxu0 0.0
    %256 = vmatprep.subr.mxu0 0.0
    %257 = vmatpush2.xpose.msra.mxu0 0.0
    %258 = vmatprep.subr.mxu0 0.0
    %259 = vmatpush2.xpose.msra.mxu0 0.0
    %260 = vmatprep.subr.mxu0 0.0
    %261 = vmatpush2.xpose.msra.mxu0 0.0
    %262 = vmatprep.subr.mxu0 0.0
    %263 = vmatpush2.xpose.msra.mxu0 0.0
    %264 = vmatprep.subr.mxu0 0.0
    %265 = vmatpush2.xpose.msra.mxu0 0.0
    %266 = vmatprep.subr.mxu0 0.0
    %267 = vmatpush2.xpose.msra.mxu0 0.0
    %268 = vmatprep.subr.mxu0 0.0
    %269 = vmatpush2.xpose.msra.mxu0 0.0
    %270 = vmatprep.subr.mxu0 0.0
    %271 = vmatpush2.xpose.msra.mxu0 0.0
    %272 = vmatprep.subr.mxu0 0.0
    %273 = vmatpush2.xpose.msra.mxu0 0.0
    %274 = vmatprep.subr.mxu0 0.0
    %275 = vmatpush2.xpose.msra.mxu0 0.0
    %276 = vmatprep.subr.mxu0 0.0
    %277 = vmatpush2.xpose.msra.mxu0 0.0
    %278 = vmatprep.mubr.f32.mxu0 0.0
    %279 = vmatmul.mubr.f32.gmra.mxu0 %v210
    %v280 = vpop.f32.mrf.mxu0
    %v281 = vadd.f32 0.0, %v280
    %v282 = vpop.f32.mrf.mxu0
    %283 = vdwg.mxu0
    %285 = vrot.lane.b32.xlu0 %v201, 96
    %v286 = vpop.permute.xlu0 %285
    %v288 = vsel %vm122, %v205, 0
    %v290 = vsel %vm122, %v286, 0
    %292 = vmatprep.subr.mxu0 0.0
    %293 = vmatpush1.xpose.msra.mxu0 0.0
    %294 = vmatprep.subr.mxu0 0.0
    %295 = vmatpush1.xpose.msra.mxu0 0.0
    %296 = vmatprep.subr.mxu0 0.0
    %297 = vmatpush1.xpose.msra.mxu0 0.0
    %298 = vmatprep.subr.mxu0 0.0
    %299 = vmatpush1.xpose.msra.mxu0 0.0
    %300 = vmatprep.subr.mxu0 0.0
    %301 = vmatpush1.xpose.msra.mxu0 0.0
    %302 = vmatprep.subr.mxu0 0.0
    %303 = vmatpush1.xpose.msra.mxu0 0.0
    %304 = vmatprep.subr.mxu0 0.0
    %305 = vmatpush1.xpose.msra.mxu0 0.0
    %306 = vmatprep.subr.mxu0 0.0
    %307 = vmatpush1.xpose.msra.mxu0 0.0
    %308 = vmatprep.subr.mxu0 0.0
    %309 = vmatpush1.xpose.msra.mxu0 0.0
    %310 = vmatprep.subr.mxu0 0.0
    %311 = vmatpush1.xpose.msra.mxu0 0.0
    %312 = vmatprep.subr.mxu0 0.0
    %313 = vmatpush1.xpose.msra.mxu0 0.0
    %314 = vmatprep.subr.mxu0 0.0
    %315 = vmatpush1.xpose.msra.mxu0 0.0
    %316 = vmatprep.subr.mxu0 0.0
    %317 = vmatpush1.xpose.msra.mxu0 0.0
    %318 = vmatprep.subr.mxu0 0.0
    %319 = vmatpush1.xpose.msra.mxu0 0.0
    %320 = vmatprep.subr.mxu0 0.0
    %321 = vmatpush1.xpose.msra.mxu0 0.0
    %322 = vmatprep.subr.mxu0 0.0
    %323 = vmatpush1.xpose.msra.mxu0 %v290
    %324 = vmatprep.subr.mxu0 0.0
    %325 = vmatpush2.xpose.msra.mxu0 0.0
    %326 = vmatprep.subr.mxu0 0.0
    %327 = vmatpush2.xpose.msra.mxu0 0.0
    %328 = vmatprep.subr.mxu0 0.0
    %329 = vmatpush2.xpose.msra.mxu0 0.0
    %330 = vmatprep.subr.mxu0 0.0
    %331 = vmatpush2.xpose.msra.mxu0 0.0
    %332 = vmatprep.subr.mxu0 0.0
    %333 = vmatpush2.xpose.msra.mxu0 0.0
    %334 = vmatprep.subr.mxu0 0.0
    %335 = vmatpush2.xpose.msra.mxu0 0.0
    %336 = vmatprep.subr.mxu0 0.0
    %337 = vmatpush2.xpose.msra.mxu0 0.0
    %338 = vmatprep.subr.mxu0 0.0
    %339 = vmatpush2.xpose.msra.mxu0 0.0
    %340 = vmatprep.subr.mxu0 0.0
    %341 = vmatpush2.xpose.msra.mxu0 0.0
    %342 = vmatprep.subr.mxu0 0.0
    %343 = vmatpush2.xpose.msra.mxu0 0.0
    %344 = vmatprep.subr.mxu0 0.0
    %345 = vmatpush2.xpose.msra.mxu0 0.0
    %346 = vmatprep.subr.mxu0 0.0
    %347 = vmatpush2.xpose.msra.mxu0 0.0
    %348 = vmatprep.subr.mxu0 0.0
    %349 = vmatpush2.xpose.msra.mxu0 0.0
    %350 = vmatprep.subr.mxu0 0.0
    %351 = vmatpush2.xpose.msra.mxu0 0.0
    %352 = vmatprep.subr.mxu0 0.0
    %353 = vmatpush2.xpose.msra.mxu0 0.0
    %354 = vmatprep.subr.mxu0 0.0
    %355 = vmatpush2.xpose.msra.mxu0 0.0
    %356 = vmatprep.mubr.f32.mxu0 0.0
    %357 = vmatmul.mubr.f32.gmra.mxu0 %v288
    %v358 = vpop.f32.mrf.mxu0
    %v359 = vadd.f32 0.0, %v358
    %v360 = vpop.f32.mrf.mxu0
    %361 = vdwg.mxu0
    %vm362 = vcmask 64512
    %v363 = vsel %vm362, %v281, -inf
    %364 = vmax.xlane.f32.xlu0 %v363
    %v365 = vpop.xlane.xlu0 %364
    %v366 = vsel %vm362, %v359, -inf
    %367 = vmax.xlane.f32.xlu0 %v366
    %v368 = vpop.xlane.xlu0 %367
    %v369 = vsub.f32 %v281, %v365
    %v370 = vsub.f32 %v359, %v368
    %v371 = vmul.f32 %v369, 1.442695
    %v372 = vpow.pop %v371
    %v373 = vmul.f32 %v370, 1.442695
    %v374 = vpow.pop %v373
    %v375 = vsel %vm362, %v372, 0.0
    %376 = vadd.xlane.f32.xlu0 %v375
    %v377 = vpop.xlane.xlu0 %376
    %v378 = vsel %vm362, %v374, 0.0
    %379 = vadd.xlane.f32.xlu0 %v378
    %v380 = vpop.xlane.xlu0 %379
    %v381 = vrcp.pop %v377
    %v382 = vrcp.pop %v380
    %v383 = vmul.f32 %v372, %v381
    %v384 = vmul.f32 %v374, %v382
    %385 = vrot.lane.b32.xlu0 %v196, 64
    %v386 = vpop.permute.xlu0 %385
    %v389 = vsel %vm362, %v383, 0
    %391 = vmatprep.subr.mxu0 0.0
    %392 = vmatpush1.msra.mxu0 0.0
    %393 = vmatprep.subr.mxu0 0.0
    %394 = vmatpush1.msra.mxu0 0.0
    %395 = vmatprep.subr.mxu0 0.0
    %396 = vmatpush1.msra.mxu0 0.0
    %397 = vmatprep.subr.mxu0 0.0
    %398 = vmatpush1.msra.mxu0 0.0
    %399 = vmatprep.subr.mxu0 0.0
    %400 = vmatpush1.msra.mxu0 0.0
    %401 = vmatprep.subr.mxu0 0.0
    %402 = vmatpush1.msra.mxu0 0.0
    %403 = vmatprep.subr.mxu0 0.0
    %404 = vmatpush1.msra.mxu0 0.0
    %405 = vmatprep.subr.mxu0 0.0
    %406 = vmatpush1.msra.mxu0 0.0
    %407 = vmatprep.subr.mxu0 0.0
    %408 = vmatpush1.msra.mxu0 0.0
    %409 = vmatprep.subr.mxu0 0.0
    %410 = vmatpush1.msra.mxu0 0.0
    %411 = vmatprep.subr.mxu0 0.0
    %412 = vmatpush1.msra.mxu0 0.0
    %413 = vmatprep.subr.mxu0 0.0
    %414 = vmatpush1.msra.mxu0 0.0
    %415 = vmatprep.subr.mxu0 0.0
    %416 = vmatpush1.msra.mxu0 0.0
    %417 = vmatprep.subr.mxu0 0.0
    %418 = vmatpush1.msra.mxu0 0.0
    %419 = vmatprep.subr.mxu0 0.0
    %420 = vmatpush1.msra.mxu0 0.0
    %421 = vmatprep.subr.mxu0 0.0
    %422 = vmatpush1.msra.mxu0 %v386
    %423 = vmatprep.subr.mxu0 0.0
    %424 = vmatpush2.msra.mxu0 0.0
    %425 = vmatprep.subr.mxu0 0.0
    %426 = vmatpush2.msra.mxu0 0.0
    %427 = vmatprep.subr.mxu0 0.0
    %428 = vmatpush2.msra.mxu0 0.0
    %429 = vmatprep.subr.mxu0 0.0
    %430 = vmatpush2.msra.mxu0 0.0
    %431 = vmatprep.subr.mxu0 0.0
    %432 = vmatpush2.msra.mxu0 0.0
    %433 = vmatprep.subr.mxu0 0.0
    %434 = vmatpush2.msra.mxu0 0.0
    %435 = vmatprep.subr.mxu0 0.0
    %436 = vmatpush2.msra.mxu0 0.0
    %437 = vmatprep.subr.mxu0 0.0
    %438 = vmatpush2.msra.mxu0 0.0
    %439 = vmatprep.subr.mxu0 0.0
    %440 = vmatpush2.msra.mxu0 0.0
    %441 = vmatprep.subr.mxu0 0.0
    %442 = vmatpush2.msra.mxu0 0.0
    %443 = vmatprep.subr.mxu0 0.0
    %444 = vmatpush2.msra.mxu0 0.0
    %445 = vmatprep.subr.mxu0 0.0
    %446 = vmatpush2.msra.mxu0 0.0
    %447 = vmatprep.subr.mxu0 0.0
    %448 = vmatpush2.msra.mxu0 0.0
    %449 = vmatprep.subr.mxu0 0.0
    %450 = vmatpush2.msra.mxu0 0.0
    %451 = vmatprep.subr.mxu0 0.0
    %452 = vmatpush2.msra.mxu0 0.0
    %453 = vmatprep.subr.mxu0 0.0
    %454 = vmatpush2.msra.mxu0 0.0
    %455 = vmatprep.mubr.f32.mxu0 0.0
    %456 = vmatmul.mubr.f32.gmra.mxu0 %v389
    %v457 = vpop.f32.mrf.mxu0
    %v458 = vadd.f32 0.0, %v457
    %v459 = vpop.f32.mrf.mxu0
    %460 = vdwg.mxu0
    %461 = vrot.lane.b32.xlu0 %v201, 64
    %v462 = vpop.permute.xlu0 %461
    %v465 = vsel %vm362, %v384, 0
    %467 = vmatprep.subr.mxu0 0.0
    %468 = vmatpush1.msra.mxu0 0.0
    %469 = vmatprep.subr.mxu0 0.0
    %470 = vmatpush1.msra.mxu0 0.0
    %471 = vmatprep.subr.mxu0 0.0
    %472 = vmatpush1.msra.mxu0 0.0
    %473 = vmatprep.subr.mxu0 0.0
    %474 = vmatpush1.msra.mxu0 0.0
    %475 = vmatprep.subr.mxu0 0.0
    %476 = vmatpush1.msra.mxu0 0.0
    %477 = vmatprep.subr.mxu0 0.0
    %478 = vmatpush1.msra.mxu0 0.0
    %479 = vmatprep.subr.mxu0 0.0
    %480 = vmatpush1.msra.mxu0 0.0
    %481 = vmatprep.subr.mxu0 0.0
    %482 = vmatpush1.msra.mxu0 0.0
    %483 = vmatprep.subr.mxu0 0.0
    %484 = vmatpush1.msra.mxu0 0.0
    %485 = vmatprep.subr.mxu0 0.0
    %486 = vmatpush1.msra.mxu0 0.0
    %487 = vmatprep.subr.mxu0 0.0
    %488 = vmatpush1.msra.mxu0 0.0
    %489 = vmatprep.subr.mxu0 0.0
    %490 = vmatpush1.msra.mxu0 0.0
    %491 = vmatprep.subr.mxu0 0.0
    %492 = vmatpush1.msra.mxu0 0.0
    %493 = vmatprep.subr.mxu0 0.0
    %494 = vmatpush1.msra.mxu0 0.0
    %495 = vmatprep.subr.mxu0 0.0
    %496 = vmatpush1.msra.mxu0 0.0
    %497 = vmatprep.subr.mxu0 0.0
    %498 = vmatpush1.msra.mxu0 %v462
    %499 = vmatprep.subr.mxu0 0.0
    %500 = vmatpush2.msra.mxu0 0.0
    %501 = vmatprep.subr.mxu0 0.0
    %502 = vmatpush2.msra.mxu0 0.0
    %503 = vmatprep.subr.mxu0 0.0
    %504 = vmatpush2.msra.mxu0 0.0
    %505 = vmatprep.subr.mxu0 0.0
    %506 = vmatpush2.msra.mxu0 0.0
    %507 = vmatprep.subr.mxu0 0.0
    %508 = vmatpush2.msra.mxu0 0.0
    %509 = vmatprep.subr.mxu0 0.0
    %510 = vmatpush2.msra.mxu0 0.0
    %511 = vmatprep.subr.mxu0 0.0
    %512 = vmatpush2.msra.mxu0 0.0
    %513 = vmatprep.subr.mxu0 0.0
    %514 = vmatpush2.msra.mxu0 0.0
    %515 = vmatprep.subr.mxu0 0.0
    %516 = vmatpush2.msra.mxu0 0.0
    %517 = vmatprep.subr.mxu0 0.0
    %518 = vmatpush2.msra.mxu0 0.0
    %519 = vmatprep.subr.mxu0 0.0
    %520 = vmatpush2.msra.mxu0 0.0
    %521 = vmatprep.subr.mxu0 0.0
    %522 = vmatpush2.msra.mxu0 0.0
    %523 = vmatprep.subr.mxu0 0.0
    %524 = vmatpush2.msra.mxu0 0.0
    %525 = vmatprep.subr.mxu0 0.0
    %526 = vmatpush2.msra.mxu0 0.0
    %527 = vmatprep.subr.mxu0 0.0
    %528 = vmatpush2.msra.mxu0 0.0
    %529 = vmatprep.subr.mxu0 0.0
    %530 = vmatpush2.msra.mxu0 0.0
    %531 = vmatprep.mubr.f32.mxu0 0.0
    %532 = vmatmul.mubr.f32.gmra.mxu0 %v465
    %v533 = vpop.f32.mrf.mxu0
    %v534 = vadd.f32 0.0, %v533
    %v535 = vpop.f32.mrf.mxu0
    %536 = vdwg.mxu0
    %v537 = vld [vmem:[%s3] sm:$0xff]
    %v538 = vld [vmem:[%s3 + $0x8] sm:$0xff]
    %v539 = vld [vmem:[%s3 + $0x10] sm:$0xff]
    %v540 = vld [vmem:[%s3 + $0x18] sm:$0xff]
    %v541 = vld [vmem:[%s4] sm:$0x1]
    %v543 = vlaneseq
    %v544 = vshrl.u32 %v543, 7
    %v545 = vsub.s32 0, %v544
    %v546 = vrot.slane %v541, %v545
    %v549 = vsel %vm122, %v458, 0
    %v552 = vsel %vm122, %v534, 0
    %554 = vmatprep.subr.mxu0 0.0
    %555 = vmatpush1.msra.mxu0 0.0
    %556 = vmatprep.subr.mxu0 0.0
    %557 = vmatpush1.msra.mxu0 0.0
    %558 = vmatprep.subr.mxu0 0.0
    %559 = vmatpush1.msra.mxu0 0.0
    %560 = vmatprep.subr.mxu0 0.0
    %561 = vmatpush1.msra.mxu0 0.0
    %562 = vmatprep.subr.mxu0 0.0
    %563 = vmatpush1.msra.mxu0 0.0
    %564 = vmatprep.subr.mxu0 0.0
    %565 = vmatpush1.msra.mxu0 0.0
    %566 = vmatprep.subr.mxu0 0.0
    %567 = vmatpush1.msra.mxu0 0.0
    %568 = vmatprep.subr.mxu0 0.0
    %569 = vmatpush1.msra.mxu0 0.0
    %570 = vmatprep.subr.mxu0 0.0
    %571 = vmatpush1.msra.mxu0 0.0
    %572 = vmatprep.subr.mxu0 0.0
    %573 = vmatpush1.msra.mxu0 0.0
    %574 = vmatprep.subr.mxu0 0.0
    %575 = vmatpush1.msra.mxu0 0.0
    %576 = vmatprep.subr.mxu0 0.0
    %577 = vmatpush1.msra.mxu0 0.0
    %578 = vmatprep.subr.mxu0 0.0
    %579 = vmatpush1.msra.mxu0 %v540
    %580 = vmatprep.subr.mxu0 0.0
    %581 = vmatpush1.msra.mxu0 %v539
    %582 = vmatprep.subr.mxu0 0.0
    %583 = vmatpush1.msra.mxu0 %v538
    %584 = vmatprep.subr.mxu0 0.0
    %585 = vmatpush1.msra.mxu0 %v537
    %586 = vmatprep.subr.mxu0 0.0
    %587 = vmatpush2.msra.mxu0 0.0
    %588 = vmatprep.subr.mxu0 0.0
    %589 = vmatpush2.msra.mxu0 0.0
    %590 = vmatprep.subr.mxu0 0.0
    %591 = vmatpush2.msra.mxu0 0.0
    %592 = vmatprep.subr.mxu0 0.0
    %593 = vmatpush2.msra.mxu0 0.0
    %594 = vmatprep.subr.mxu0 0.0
    %595 = vmatpush2.msra.mxu0 0.0
    %596 = vmatprep.subr.mxu0 0.0
    %597 = vmatpush2.msra.mxu0 0.0
    %598 = vmatprep.subr.mxu0 0.0
    %599 = vmatpush2.msra.mxu0 0.0
    %600 = vmatprep.subr.mxu0 0.0
    %601 = vmatpush2.msra.mxu0 0.0
    %602 = vmatprep.subr.mxu0 0.0
    %603 = vmatpush2.msra.mxu0 0.0
    %604 = vmatprep.subr.mxu0 0.0
    %605 = vmatpush2.msra.mxu0 0.0
    %606 = vmatprep.subr.mxu0 0.0
    %607 = vmatpush2.msra.mxu0 0.0
    %608 = vmatprep.subr.mxu0 0.0
    %609 = vmatpush2.msra.mxu0 0.0
    %610 = vmatprep.subr.mxu0 0.0
    %611 = vmatpush2.msra.mxu0 0.0
    %612 = vmatprep.subr.mxu0 0.0
    %613 = vmatpush2.msra.mxu0 0.0
    %614 = vmatprep.subr.mxu0 0.0
    %615 = vmatpush2.msra.mxu0 0.0
    %616 = vmatprep.subr.mxu0 0.0
    %617 = vmatpush2.msra.mxu0 0.0
    %618 = vmatprep.mubr.f32.mxu0 0.0
    %619 = vmatmul.mubr.f32.gmra.mxu0 %v549
    %v620 = vpop.f32.mrf.mxu0
    %v621 = vadd.f32 %v546, %v620
    %v622 = vpop.f32.mrf.mxu0
    %623 = vmatprep.mubr.f32.mxu0 0.0
    %624 = vmatmul.mubr.f32.gmra.mxu0 %v552
    %v625 = vpop.f32.mrf.mxu0
    %v626 = vadd.f32 %v546, %v625
    %v627 = vpop.f32.mrf.mxu0
    %628 = vdwg.mxu0
    %v629 = vadd.f32 %v109, %v621
    %v630 = vadd.f32 %v110, %v626
    %v631 = vld [vmem:[%s5] sm:$0x1]
    %v632 = vld [vmem:[%s6] sm:$0x1]
    %v633 = vsel %vm122, %v629, 0.0
    %634 = vadd.xlane.f32.xlu0 %v633
    %v635 = vpop.xlane.xlu0 %634
    %v636 = vsel %vm122, %v630, 0.0
    %637 = vadd.xlane.f32.xlu0 %v636
    %v638 = vpop.xlane.xlu0 %637
    %v639 = vrcp.pop 32.0
    %v640 = vmul.f32 %v635, %v639
    %v641 = vmul.f32 %v638, %v639
    %v642 = vsub.f32 %v629, %v640
    %v643 = vsub.f32 %v630, %v641
    %v644 = vmul.f32 %v642, %v642
    %v645 = vmul.f32 %v643, %v643
    %v646 = vsel %vm122, %v644, 0.0
    %647 = vadd.xlane.f32.xlu0 %v646
    %v648 = vpop.xlane.xlu0 %647
    %v649 = vsel %vm122, %v645, 0.0
    %650 = vadd.xlane.f32.xlu0 %v649
    %v651 = vpop.xlane.xlu0 %650
    %v652 = vmul.f32 %v648, %v639
    %v653 = vmul.f32 %v651, %v639
    %v654 = vadd.f32 %v652, 1e-05
    %v655 = vadd.f32 %v653, 1e-05
    %v656 = vrsqrt.pop %v654
    %v657 = vrsqrt.pop %v655
    %v658 = vmul.f32 %v642, %v656
    %v659 = vmul.f32 %v643, %v657
    %v661 = vlaneseq
    %v662 = vshrl.u32 %v661, 7
    %v663 = vsub.s32 0, %v662
    %v664 = vrot.slane %v631, %v663
    %v666 = vmul.f32 %v658, %v664
    %v667 = vmul.f32 %v659, %v664
    %v669 = vlaneseq
    %v670 = vshrl.u32 %v669, 7
    %v671 = vsub.s32 0, %v670
    %v672 = vrot.slane %v632, %v671
    %v674 = vadd.f32 %v666, %v672
    %v675 = vadd.f32 %v667, %v672
    %v676 = vld [vmem:[%s7] sm:$0xff]
    %v677 = vld [vmem:[%s7 + $0x8] sm:$0xff]
    %v678 = vld [vmem:[%s7 + $0x10] sm:$0xff]
    %v679 = vld [vmem:[%s7 + $0x18] sm:$0xff]
    %v680 = vld [vmem:[%s7 + $0x20] sm:$0xff]
    %v681 = vld [vmem:[%s7 + $0x28] sm:$0xff]
    %v682 = vld [vmem:[%s7 + $0x30] sm:$0xff]
    %v683 = vld [vmem:[%s7 + $0x38] sm:$0xff]
    %v684 = vld [vmem:[%s7 + $0x40] sm:$0xff]
    %v685 = vld [vmem:[%s7 + $0x48] sm:$0xff]
    %v686 = vld [vmem:[%s7 + $0x50] sm:$0xff]
    %v687 = vld [vmem:[%s7 + $0x58] sm:$0xff]
    %v688 = vld [vmem:[%s7 + $0x60] sm:$0xff]
    %v689 = vld [vmem:[%s7 + $0x68] sm:$0xff]
    %v690 = vld [vmem:[%s7 + $0x70] sm:$0xff]
    %v691 = vld [vmem:[%s7 + $0x78] sm:$0xff]
    %v692 = vld [vmem:[%s8] sm:$0xf]
    %v694 = vlaneseq
    %v695 = vshrl.u32 %v694, 7
    %v696 = vsub.s32 0, %v695
    %v697 = vrot.slane %v692, %v696
    %v698 = vlaneseq
    %v699 = vshrl.u32 %v698, 7
    %v700 = vsub.s32 1, %v699
    %v701 = vrot.slane %v692, %v700
    %v702 = vlaneseq
    %v703 = vshrl.u32 %v702, 7
    %v704 = vsub.s32 2, %v703
    %v705 = vrot.slane %v692, %v704
    %v706 = vlaneseq
    %v707 = vshrl.u32 %v706, 7
    %v708 = vsub.s32 3, %v707
    %v709 = vrot.slane %v692, %v708
    %v715 = vsel %vm122, %v674, 0
    %v718 = vsel %vm122, %v675, 0
    %720 = vmatprep.subr.mxu0 0.0
    %721 = vmatpush1.msra.mxu0 0.0
    %722 = vmatprep.subr.mxu0 0.0
    %723 = vmatpush1.msra.mxu0 0.0
    %724 = vmatprep.subr.mxu0 0.0
    %725 = vmatpush1.msra.mxu0 0.0
    %726 = vmatprep.subr.mxu0 0.0
    %727 = vmatpush1.msra.mxu0 0.0
    %728 = vmatprep.subr.mxu0 0.0
    %729 = vmatpush1.msra.mxu0 0.0
    %730 = vmatprep.subr.mxu0 0.0
    %731 = vmatpush1.msra.mxu0 0.0
    %732 = vmatprep.subr.mxu0 0.0
    %733 = vmatpush1.msra.mxu0 0.0
    %734 = vmatprep.subr.mxu0 0.0
    %735 = vmatpush1.msra.mxu0 0.0
    %736 = vmatprep.subr.mxu0 0.0
    %737 = vmatpush1.msra.mxu0 0.0
    %738 = vmatprep.subr.mxu0 0.0
    %739 = vmatpush1.msra.mxu0 0.0
    %740 = vmatprep.subr.mxu0 0.0
    %741 = vmatpush1.msra.mxu0 0.0
    %742 = vmatprep.subr.mxu0 0.0
    %743 = vmatpush1.msra.mxu0 0.0
    %744 = vmatprep.subr.mxu0 %v689
    %745 = vmatpush1.msra.mxu0 %v688
    %746 = vmatprep.subr.mxu0 %v685
    %747 = vmatpush1.msra.mxu0 %v684
    %748 = vmatprep.subr.mxu0 %v681
    %749 = vmatpush1.msra.mxu0 %v680
    %750 = vmatprep.subr.mxu0 %v677
    %751 = vmatpush1.msra.mxu0 %v676
    %752 = vmatprep.subr.mxu0 0.0
    %753 = vmatpush2.msra.mxu0 0.0
    %754 = vmatprep.subr.mxu0 0.0
    %755 = vmatpush2.msra.mxu0 0.0
    %756 = vmatprep.subr.mxu0 0.0
    %757 = vmatpush2.msra.mxu0 0.0
    %758 = vmatprep.subr.mxu0 0.0
    %759 = vmatpush2.msra.mxu0 0.0
    %760 = vmatprep.subr.mxu0 0.0
    %761 = vmatpush2.msra.mxu0 0.0
    %762 = vmatprep.subr.mxu0 0.0
    %763 = vmatpush2.msra.mxu0 0.0
    %764 = vmatprep.subr.mxu0 0.0
    %765 = vmatpush2.msra.mxu0 0.0
    %766 = vmatprep.subr.mxu0 0.0
    %767 = vmatpush2.msra.mxu0 0.0
    %768 = vmatprep.subr.mxu0 0.0
    %769 = vmatpush2.msra.mxu0 0.0
    %770 = vmatprep.subr.mxu0 0.0
    %771 = vmatpush2.msra.mxu0 0.0
    %772 = vmatprep.subr.mxu0 0.0
    %773 = vmatpush2.msra.mxu0 0.0
    %774 = vmatprep.subr.mxu0 0.0
    %775 = vmatpush2.msra.mxu0 0.0
    %776 = vmatprep.subr.mxu0 0.0
    %777 = vmatpush2.msra.mxu0 0.0
    %778 = vmatprep.subr.mxu0 0.0
    %779 = vmatpush2.msra.mxu0 0.0
    %780 = vmatprep.subr.mxu0 0.0
    %781 = vmatpush2.msra.mxu0 0.0
    %782 = vmatprep.subr.mxu0 0.0
    %783 = vmatpush2.msra.mxu0 0.0
    %784 = vmatprep.mubr.f32.mxu0 0.0
    %785 = vmatmul.mubr.f32.gmra.mxu0 %v715
    %v786 = vpop.f32.mrf.mxu0
    %v787 = vadd.f32 %v697, %v786
    %v788 = vpop.f32.mrf.mxu0
    %v789 = vadd.f32 %v701, %v788
    %790 = vmatprep.mubr.f32.mxu0 0.0
    %791 = vmatmul.mubr.f32.gmra.mxu0 %v718
    %v792 = vpop.f32.mrf.mxu0
    %v793 = vadd.f32 %v697, %v792
    %v794 = vpop.f32.mrf.mxu0
    %v795 = vadd.f32 %v701, %v794
    %796 = vdwg.mxu0
    %797 = vmatprep.subr.mxu0 0.0
    %798 = vmatpush1.msra.mxu0 0.0
    %799 = vmatprep.subr.mxu0 0.0
    %800 = vmatpush1.msra.mxu0 0.0
    %801 = vmatprep.subr.mxu0 0.0
    %802 = vmatpush1.msra.mxu0 0.0
    %803 = vmatprep.subr.mxu0 0.0
    %804 = vmatpush1.msra.mxu0 0.0
    %805 = vmatprep.subr.mxu0 0.0
    %806 = vmatpush1.msra.mxu0 0.0
    %807 = vmatprep.subr.mxu0 0.0
    %808 = vmatpush1.msra.mxu0 0.0
    %809 = vmatprep.subr.mxu0 0.0
    %810 = vmatpush1.msra.mxu0 0.0
    %811 = vmatprep.subr.mxu0 0.0
    %812 = vmatpush1.msra.mxu0 0.0
    %813 = vmatprep.subr.mxu0 0.0
    %814 = vmatpush1.msra.mxu0 0.0
    %815 = vmatprep.subr.mxu0 0.0
    %816 = vmatpush1.msra.mxu0 0.0
    %817 = vmatprep.subr.mxu0 0.0
    %818 = vmatpush1.msra.mxu0 0.0
    %819 = vmatprep.subr.mxu0 0.0
    %820 = vmatpush1.msra.mxu0 0.0
    %821 = vmatprep.subr.mxu0 %v691
    %822 = vmatpush1.msra.mxu0 %v690
    %823 = vmatprep.subr.mxu0 %v687
    %824 = vmatpush1.msra.mxu0 %v686
    %825 = vmatprep.subr.mxu0 %v683
    %826 = vmatpush1.msra.mxu0 %v682
    %827 = vmatprep.subr.mxu0 %v679
    %828 = vmatpush1.msra.mxu0 %v678
    %829 = vmatprep.subr.mxu0 0.0
    %830 = vmatpush2.msra.mxu0 0.0
    %831 = vmatprep.subr.mxu0 0.0
    %832 = vmatpush2.msra.mxu0 0.0
    %833 = vmatprep.subr.mxu0 0.0
    %834 = vmatpush2.msra.mxu0 0.0
    %835 = vmatprep.subr.mxu0 0.0
    %836 = vmatpush2.msra.mxu0 0.0
    %837 = vmatprep.subr.mxu0 0.0
    %838 = vmatpush2.msra.mxu0 0.0
    %839 = vmatprep.subr.mxu0 0.0
    %840 = vmatpush2.msra.mxu0 0.0
    %841 = vmatprep.subr.mxu0 0.0
    %842 = vmatpush2.msra.mxu0 0.0
    %843 = vmatprep.subr.mxu0 0.0
    %844 = vmatpush2.msra.mxu0 0.0
    %845 = vmatprep.subr.mxu0 0.0
    %846 = vmatpush2.msra.mxu0 0.0
    %847 = vmatprep.subr.mxu0 0.0
    %848 = vmatpush2.msra.mxu0 0.0
    %849 = vmatprep.subr.mxu0 0.0
    %850 = vmatpush2.msra.mxu0 0.0
    %851 = vmatprep.subr.mxu0 0.0
    %852 = vmatpush2.msra.mxu0 0.0
    %853 = vmatprep.subr.mxu0 0.0
    %854 = vmatpush2.msra.mxu0 0.0
    %855 = vmatprep.subr.mxu0 0.0
    %856 = vmatpush2.msra.mxu0 0.0
    %857 = vmatprep.subr.mxu0 0.0
    %858 = vmatpush2.msra.mxu0 0.0
    %859 = vmatprep.subr.mxu0 0.0
    %860 = vmatpush2.msra.mxu0 0.0
    %861 = vmatprep.mubr.f32.mxu0 0.0
    %862 = vmatmul.mubr.f32.gmra.mxu0 %v715
    %v863 = vpop.f32.mrf.mxu0
    %v864 = vadd.f32 %v705, %v863
    %v865 = vpop.f32.mrf.mxu0
    %v866 = vadd.f32 %v709, %v865
    %867 = vmatprep.mubr.f32.mxu0 0.0
    %868 = vmatmul.mubr.f32.gmra.mxu0 %v718
    %v869 = vpop.f32.mrf.mxu0
    %v870 = vadd.f32 %v705, %v869
    %v871 = vpop.f32.mrf.mxu0
    %v872 = vadd.f32 %v709, %v871
    %873 = vdwg.mxu0
    %v874 = vmax.f32 %v787, 0.0
    %v875 = vmax.f32 %v789, 0.0
    %v876 = vmax.f32 %v864, 0.0
    %v877 = vmax.f32 %v866, 0.0
    %v878 = vmax.f32 %v793, 0.0
    %v879 = vmax.f32 %v795, 0.0
    %v880 = vmax.f32 %v870, 0.0
    %v881 = vmax.f32 %v872, 0.0
    %v882 = vld [vmem:[%s9] sm:$0xff]
    %v883 = vld [vmem:[%s9 + $0x8] sm:$0xff]
    %v884 = vld [vmem:[%s9 + $0x10] sm:$0xff]
    %v885 = vld [vmem:[%s9 + $0x18] sm:$0xff]
    %v886 = vld [vmem:[%s9 + $0x20] sm:$0xff]
    %v887 = vld [vmem:[%s9 + $0x28] sm:$0xff]
    %v888 = vld [vmem:[%s9 + $0x30] sm:$0xff]
    %v889 = vld [vmem:[%s9 + $0x38] sm:$0xff]
    %v890 = vld [vmem:[%s9 + $0x40] sm:$0xff]
    %v891 = vld [vmem:[%s9 + $0x48] sm:$0xff]
    %v892 = vld [vmem:[%s9 + $0x50] sm:$0xff]
    %v893 = vld [vmem:[%s9 + $0x58] sm:$0xff]
    %v894 = vld [vmem:[%s9 + $0x60] sm:$0xff]
    %v895 = vld [vmem:[%s9 + $0x68] sm:$0xff]
    %v896 = vld [vmem:[%s9 + $0x70] sm:$0xff]
    %v897 = vld [vmem:[%s9 + $0x78] sm:$0xff]
    %v898 = vld [vmem:[%s9 + $0x80] sm:$0xff]
    %v899 = vld [vmem:[%s9 + $0x88] sm:$0xff]
    %v900 = vld [vmem:[%s9 + $0x90] sm:$0xff]
    %v901 = vld [vmem:[%s9 + $0x98] sm:$0xff]
    %v902 = vld [vmem:[%s9 + $0xa0] sm:$0xff]
    %v903 = vld [vmem:[%s9 + $0xa8] sm:$0xff]
    %v904 = vld [vmem:[%s9 + $0xb0] sm:$0xff]
    %v905 = vld [vmem:[%s9 + $0xb8] sm:$0xff]
    %v906 = vld [vmem:[%s9 + $0xc0] sm:$0xff]
    %v907 = vld [vmem:[%s9 + $0xc8] sm:$0xff]
    %v908 = vld [vmem:[%s9 + $0xd0] sm:$0xff]
    %v909 = vld [vmem:[%s9 + $0xd8] sm:$0xff]
    %v910 = vld [vmem:[%s9 + $0xe0] sm:$0xff]
    %v911 = vld [vmem:[%s9 + $0xe8] sm:$0xff]
    %v912 = vld [vmem:[%s9 + $0xf0] sm:$0xff]
    %v913 = vld [vmem:[%s9 + $0xf8] sm:$0xff]
    %v914 = vld [vmem:[%s9 + $0x100] sm:$0xff]
    %v915 = vld [vmem:[%s9 + $0x108] sm:$0xff]
    %v916 = vld [vmem:[%s9 + $0x110] sm:$0xff]
    %v917 = vld [vmem:[%s9 + $0x118] sm:$0xff]
    %v918 = vld [vmem:[%s9 + $0x120] sm:$0xff]
    %v919 = vld [vmem:[%s9 + $0x128] sm:$0xff]
    %v920 = vld [vmem:[%s9 + $0x130] sm:$0xff]
    %v921 = vld [vmem:[%s9 + $0x138] sm:$0xff]
    %v922 = vld [vmem:[%s9 + $0x140] sm:$0xff]
    %v923 = vld [vmem:[%s9 + $0x148] sm:$0xff]
    %v924 = vld [vmem:[%s9 + $0x150] sm:$0xff]
    %v925 = vld [vmem:[%s9 + $0x158] sm:$0xff]
    %v926 = vld [vmem:[%s9 + $0x160] sm:$0xff]
    %v927 = vld [vmem:[%s9 + $0x168] sm:$0xff]
    %v928 = vld [vmem:[%s9 + $0x170] sm:$0xff]
    %v929 = vld [vmem:[%s9 + $0x178] sm:$0xff]
    %v930 = vld [vmem:[%s9 + $0x180] sm:$0xff]
    %v931 = vld [vmem:[%s9 + $0x188] sm:$0xff]
    %v932 = vld [vmem:[%s9 + $0x190] sm:$0xff]
    %v933 = vld [vmem:[%s9 + $0x198] sm:$0xff]
    %v934 = vld [vmem:[%s9 + $0x1a0] sm:$0xff]
    %v935 = vld [vmem:[%s9 + $0x1a8] sm:$0xff]
    %v936 = vld [vmem:[%s9 + $0x1b0] sm:$0xff]
    %v937 = vld [vmem:[%s9 + $0x1b8] sm:$0xff]
    %v938 = vld [vmem:[%s9 + $0x1c0] sm:$0xff]
    %v939 = vld [vmem:[%s9 + $0x1c8] sm:$0xff]
    %v940 = vld [vmem:[%s9 + $0x1d0] sm:$0xff]
    %v941 = vld [vmem:[%s9 + $0x1d8] sm:$0xff]
    %v942 = vld [vmem:[%s9 + $0x1e0] sm:$0xff]
    %v943 = vld [vmem:[%s9 + $0x1e8] sm:$0xff]
    %v944 = vld [vmem:[%s9 + $0x1f0] sm:$0xff]
    %v945 = vld [vmem:[%s9 + $0x1f8] sm:$0xff]
    %v946 = vld [vmem:[%s10] sm:$0x1]
    %v948 = vlaneseq
    %v949 = vshrl.u32 %v948, 7
    %v950 = vsub.s32 0, %v949
    %v951 = vrot.slane %v946, %v950
    %953 = vmatprep.subr.mxu0 0.0
    %954 = vmatpush1.msra.mxu0 %v897
    %955 = vmatprep.subr.mxu0 0.0
    %956 = vmatpush1.msra.mxu0 %v896
    %957 = vmatprep.subr.mxu0 0.0
    %958 = vmatpush1.msra.mxu0 %v895
    %959 = vmatprep.subr.mxu0 0.0
    %960 = vmatpush1.msra.mxu0 %v894
    %961 = vmatprep.subr.mxu0 0.0
    %962 = vmatpush1.msra.mxu0 %v893
    %963 = vmatprep.subr.mxu0 0.0
    %964 = vmatpush1.msra.mxu0 %v892
    %965 = vmatprep.subr.mxu0 0.0
    %966 = vmatpush1.msra.mxu0 %v891
    %967 = vmatprep.subr.mxu0 0.0
    %968 = vmatpush1.msra.mxu0 %v890
    %969 = vmatprep.subr.mxu0 0.0
    %970 = vmatpush1.msra.mxu0 %v889
    %971 = vmatprep.subr.mxu0 0.0
    %972 = vmatpush1.msra.mxu0 %v888
    %973 = vmatprep.subr.mxu0 0.0
    %974 = vmatpush1.msra.mxu0 %v887
    %975 = vmatprep.subr.mxu0 0.0
    %976 = vmatpush1.msra.mxu0 %v886
    %977 = vmatprep.subr.mxu0 0.0
    %978 = vmatpush1.msra.mxu0 %v885
    %979 = vmatprep.subr.mxu0 0.0
    %980 = vmatpush1.msra.mxu0 %v884
    %981 = vmatprep.subr.mxu0 0.0
    %982 = vmatpush1.msra.mxu0 %v883
    %983 = vmatprep.subr.mxu0 0.0
    %984 = vmatpush1.msra.mxu0 %v882
    %985 = vmatprep.subr.mxu0 0.0
    %986 = vmatpush2.msra.mxu0 %v913
    %987 = vmatprep.subr.mxu0 0.0
    %988 = vmatpush2.msra.mxu0 %v912
    %989 = vmatprep.subr.mxu0 0.0
    %990 = vmatpush2.msra.mxu0 %v911
    %991 = vmatprep.subr.mxu0 0.0
    %992 = vmatpush2.msra.mxu0 %v910
    %993 = vmatprep.subr.mxu0 0.0
    %994 = vmatpush2.msra.mxu0 %v909
    %995 = vmatprep.subr.mxu0 0.0
    %996 = vmatpush2.msra.mxu0 %v908
    %997 = vmatprep.subr.mxu0 0.0
    %998 = vmatpush2.msra.mxu0 %v907
    %999 = vmatprep.subr.mxu0 0.0
    %1000 = vmatpush2.msra.mxu0 %v906
    %1001 = vmatprep.subr.mxu0 0.0
    %1002 = vmatpush2.msra.mxu0 %v905
    %1003 = vmatprep.subr.mxu0 0.0
    %1004 = vmatpush2.msra.mxu0 %v904
    %1005 = vmatprep.subr.mxu0 0.0
    %1006 = vmatpush2.msra.mxu0 %v903
    %1007 = vmatprep.subr.mxu0 0.0
    %1008 = vmatpush2.msra.mxu0 %v902
    %1009 = vmatprep.subr.mxu0 0.0
    %1010 = vmatpush2.msra.mxu0 %v901
    %1011 = vmatprep.subr.mxu0 0.0
    %1012 = vmatpush2.msra.mxu0 %v900
    %1013 = vmatprep.subr.mxu0 0.0
    %1014 = vmatpush2.msra.mxu0 %v899
    %1015 = vmatprep.subr.mxu0 0.0
    %1016 = vmatpush2.msra.mxu0 %v898
    %1017 = vmatprep.mubr.f32.mxu0 %v875
    %1018 = vmatmul.mubr.f32.gmra.mxu0 %v874
    %v1019 = vpop.f32.mrf.mxu0
    %v1020 = vadd.f32 %v951, %v1019
    %v1021 = vpop.f32.mrf.mxu0
    %1022 = vmatprep.mubr.f32.mxu0 %v879
    %1023 = vmatmul.mubr.f32.gmra.mxu0 %v878
    %v1024 = vpop.f32.mrf.mxu0
    %v1025 = vadd.f32 %v951, %v1024
    %v1026 = vpop.f32.mrf.mxu0
    %1027 = vdwg.mxu0
    %1028 = vmatprep.subr.mxu0 0.0
    %1029 = vmatpush1.msra.mxu0 %v929
    %1030 = vmatprep.subr.mxu0 0.0
    %1031 = vmatpush1.msra.mxu0 %v928
    %1032 = vmatprep.subr.mxu0 0.0
    %1033 = vmatpush1.msra.mxu0 %v927
    %1034 = vmatprep.subr.mxu0 0.0
    %1035 = vmatpush1.msra.mxu0 %v926
    %1036 = vmatprep.subr.mxu0 0.0
    %1037 = vmatpush1.msra.mxu0 %v925
    %1038 = vmatprep.subr.mxu0 0.0
    %1039 = vmatpush1.msra.mxu0 %v924
    %1040 = vmatprep.subr.mxu0 0.0
    %1041 = vmatpush1.msra.mxu0 %v923
    %1042 = vmatprep.subr.mxu0 0.0
    %1043 = vmatpush1.msra.mxu0 %v922
    %1044 = vmatprep.subr.mxu0 0.0
    %1045 = vmatpush1.msra.mxu0 %v921
    %1046 = vmatprep.subr.mxu0 0.0
    %1047 = vmatpush1.msra.mxu0 %v920
    %1048 = vmatprep.subr.mxu0 0.0
    %1049 = vmatpush1.msra.mxu0 %v919
    %1050 = vmatprep.subr.mxu0 0.0
    %1051 = vmatpush1.msra.mxu0 %v918
    %1052 = vmatprep.subr.mxu0 0.0
    %1053 = vmatpush1.msra.mxu0 %v917
    %1054 = vmatprep.subr.mxu0 0.0
    %1055 = vmatpush1.msra.mxu0 %v916
    %1056 = vmatprep.subr.mxu0 0.0
    %1057 = vmatpush1.msra.mxu0 %v915
    %1058 = vmatprep.subr.mxu0 0.0
    %1059 = vmatpush1.msra.mxu0 %v914
    %1060 = vmatprep.subr.mxu0 0.0
    %1061 = vmatpush2.msra.mxu0 %v945
    %1062 = vmatprep.subr.mxu0 0.0
    %1063 = vmatpush2.msra.mxu0 %v944
    %1064 = vmatprep.subr.mxu0 0.0
    %1065 = vmatpush2.msra.mxu0 %v943
    %1066 = vmatprep.subr.mxu0 0.0
    %1067 = vmatpush2.msra.mxu0 %v942
    %1068 = vmatprep.subr.mxu0 0.0
    %1069 = vmatpush2.msra.mxu0 %v941
    %1070 = vmatprep.subr.mxu0 0.0
    %1071 = vmatpush2.msra.mxu0 %v940
    %1072 = vmatprep.subr.mxu0 0.0
    %1073 = vmatpush2.msra.mxu0 %v939
    %1074 = vmatprep.subr.mxu0 0.0
    %1075 = vmatpush2.msra.mxu0 %v938
    %1076 = vmatprep.subr.mxu0 0.0
    %1077 = vmatpush2.msra.mxu0 %v937
    %1078 = vmatprep.subr.mxu0 0.0
    %1079 = vmatpush2.msra.mxu0 %v936
    %1080 = vmatprep.subr.mxu0 0.0
    %1081 = vmatpush2.msra.mxu0 %v935
    %1082 = vmatprep.subr.mxu0 0.0
    %1083 = vmatpush2.msra.mxu0 %v934
    %1084 = vmatprep.subr.mxu0 0.0
    %1085 = vmatpush2.msra.mxu0 %v933
    %1086 = vmatprep.subr.mxu0 0.0
    %1087 = vmatpush2.msra.mxu0 %v932
    %1088 = vmatprep.subr.mxu0 0.0
    %1089 = vmatpush2.msra.mxu0 %v931
    %1090 = vmatprep.subr.mxu0 0.0
    %1091 = vmatpush2.msra.mxu0 %v930
    %1092 = vmatprep.mubr.f32.mxu0 %v877
    %1093 = vmatmul.mubr.f32.gmra.mxu0 %v876
    %v1094 = vpop.f32.mrf.mxu0
    %v1095 = vadd.f32 %v1020, %v1094
    %v1096 = vpop.f32.mrf.mxu0
    %1097 = vmatprep.mubr.f32.mxu0 %v881
    %1098 = vmatmul.mubr.f32.gmra.mxu0 %v880
    %v1099 = vpop.f32.mrf.mxu0
    %v1100 = vadd.f32 %v1025, %v1099
    %v1101 = vpop.f32.mrf.mxu0
    %1102 = vdwg.mxu0
    %v1103 = vadd.f32 %v674, %v1095
    %v1104 = vadd.f32 %v675, %v1100
    %v1105 = vld [vmem:[%s11] sm:$0x1]
    %v1106 = vld [vmem:[%s12] sm:$0x1]
    %v1107 = vsel %vm122, %v1103, 0.0
    %1108 = vadd.xlane.f32.xlu0 %v1107
    %v1109 = vpop.xlane.xlu0 %1108
    %v1110 = vsel %vm122, %v1104, 0.0
    %1111 = vadd.xlane.f32.xlu0 %v1110
    %v1112 = vpop.xlane.xlu0 %1111
    %v1113 = vmul.f32 %v1109, %v639
    %v1114 = vmul.f32 %v1112, %v639
    %v1115 = vsub.f32 %v1103, %v1113
    %v1116 = vsub.f32 %v1104, %v1114
    %v1117 = vmul.f32 %v1115, %v1115
    %v1118 = vmul.f32 %v1116, %v1116
    %v1119 = vsel %vm122, %v1117, 0.0
    %1120 = vadd.xlane.f32.xlu0 %v1119
    %v1121 = vpop.xlane.xlu0 %1120
    %v1122 = vsel %vm122, %v1118, 0.0
    %1123 = vadd.xlane.f32.xlu0 %v1122
    %v1124 = vpop.xlane.xlu0 %1123
    %v1125 = vmul.f32 %v1121, %v639
    %v1126 = vmul.f32 %v1124, %v639
    %v1127 = vadd.f32 %v1125, 1e-05
    %v1128 = vadd.f32 %v1126, 1e-05
    %v1129 = vrsqrt.pop %v1127
    %v1130 = vrsqrt.pop %v1128
    %v1131 = vmul.f32 %v1115, %v1129
    %v1132 = vmul.f32 %v1116, %v1130
    %v1134 = vlaneseq
    %v1135 = vshrl.u32 %v1134, 7
    %v1136 = vsub.s32 0, %v1135
    %v1137 = vrot.slane %v1105, %v1136
    %v1139 = vmul.f32 %v1131, %v1137
    %v1140 = vmul.f32 %v1132, %v1137
    %v1142 = vlaneseq
    %v1143 = vshrl.u32 %v1142, 7
    %v1144 = vsub.s32 0, %v1143
    %v1145 = vrot.slane %v1106, %v1144
    %v1147 = vadd.f32 %v1139, %v1145
    %v1148 = vadd.f32 %v1140, %v1145
    %s1149 = scalar_lea.vmem %s1, 32
    %v1150 = vld [vmem:[%s1149] sm:$0xff]
    %v1151 = vld [vmem:[%s1149 + $0x8] sm:$0xff]
    %v1152 = vld [vmem:[%s1149 + $0x10] sm:$0xff]
    %v1153 = vld [vmem:[%s1149 + $0x18] sm:$0xff]
    %s1154 = scalar_lea.vmem %s2, 1
    %v1155 = vld [vmem:[%s1154] sm:$0x1]
    %v1157 = vlaneseq
    %v1158 = vshrl.u32 %v1157, 7
    %v1159 = vsub.s32 0, %v1158
    %v1160 = vrot.slane %v1155, %v1159
    %v1163 = vsel %vm122, %v1147, 0
    %v1166 = vsel %vm122, %v1148, 0
    %1168 = vmatprep.subr.mxu0 0.0
    %1169 = vmatpush1.msra.mxu0 0.0
    %1170 = vmatprep.subr.mxu0 0.0
    %1171 = vmatpush1.msra.mxu0 0.0
    %1172 = vmatprep.subr.mxu0 0.0
    %1173 = vmatpush1.msra.mxu0 0.0
    %1174 = vmatprep.subr.mxu0 0.0
    %1175 = vmatpush1.msra.mxu0 0.0
    %1176 = vmatprep.subr.mxu0 0.0
    %1177 = vmatpush1.msra.mxu0 0.0
    %1178 = vmatprep.subr.mxu0 0.0
    %1179 = vmatpush1.msra.mxu0 0.0
    %1180 = vmatprep.subr.mxu0 0.0
    %1181 = vmatpush1.msra.mxu0 0.0
    %1182 = vmatprep.subr.mxu0 0.0
    %1183 = vmatpush1.msra.mxu0 0.0
    %1184 = vmatprep.subr.mxu0 0.0
    %1185 = vmatpush1.msra.mxu0 0.0
    %1186 = vmatprep.subr.mxu0 0.0
    %1187 = vmatpush1.msra.mxu0 0.0
    %1188 = vmatprep.subr.mxu0 0.0
    %1189 = vmatpush1.msra.mxu0 0.0
    %1190 = vmatprep.subr.mxu0 0.0
    %1191 = vmatpush1.msra.mxu0 0.0
    %1192 = vmatprep.subr.mxu0 0.0
    %1193 = vmatpush1.msra.mxu0 %v1153
    %1194 = vmatprep.subr.mxu0 0.0
    %1195 = vmatpush1.msra.mxu0 %v1152
    %1196 = vmatprep.subr.mxu0 0.0
    %1197 = vmatpush1.msra.mxu0 %v1151
    %1198 = vmatprep.subr.mxu0 0.0
    %1199 = vmatpush1.msra.mxu0 %v1150
    %1200 = vmatprep.subr.mxu0 0.0
    %1201 = vmatpush2.msra.mxu0 0.0
    %1202 = vmatprep.subr.mxu0 0.0
    %1203 = vmatpush2.msra.mxu0 0.0
    %1204 = vmatprep.subr.mxu0 0.0
    %1205 = vmatpush2.msra.mxu0 0.0
    %1206 = vmatprep.subr.mxu0 0.0
    %1207 = vmatpush2.msra.mxu0 0.0
    %1208 = vmatprep.subr.mxu0 0.0
    %1209 = vmatpush2.msra.mxu0 0.0
    %1210 = vmatprep.subr.mxu0 0.0
    %1211 = vmatpush2.msra.mxu0 0.0
    %1212 = vmatprep.subr.mxu0 0.0
    %1213 = vmatpush2.msra.mxu0 0.0
    %1214 = vmatprep.subr.mxu0 0.0
    %1215 = vmatpush2.msra.mxu0 0.0
    %1216 = vmatprep.subr.mxu0 0.0
    %1217 = vmatpush2.msra.mxu0 0.0
    %1218 = vmatprep.subr.mxu0 0.0
    %1219 = vmatpush2.msra.mxu0 0.0
    %1220 = vmatprep.subr.mxu0 0.0
    %1221 = vmatpush2.msra.mxu0 0.0
    %1222 = vmatprep.subr.mxu0 0.0
    %1223 = vmatpush2.msra.mxu0 0.0
    %1224 = vmatprep.subr.mxu0 0.0
    %1225 = vmatpush2.msra.mxu0 0.0
    %1226 = vmatprep.subr.mxu0 0.0
    %1227 = vmatpush2.msra.mxu0 0.0
    %1228 = vmatprep.subr.mxu0 0.0
    %1229 = vmatpush2.msra.mxu0 0.0
    %1230 = vmatprep.subr.mxu0 0.0
    %1231 = vmatpush2.msra.mxu0 0.0
    %1232 = vmatprep.mubr.f32.mxu0 0.0
    %1233 = vmatmul.mubr.f32.gmra.mxu0 %v1163
    %v1234 = vpop.f32.mrf.mxu0
    %v1235 = vadd.f32 %v1160, %v1234
    %v1236 = vpop.f32.mrf.mxu0
    %1237 = vmatprep.mubr.f32.mxu0 0.0
    %1238 = vmatmul.mubr.f32.gmra.mxu0 %v1166
    %v1239 = vpop.f32.mrf.mxu0
    %v1240 = vadd.f32 %v1160, %v1239
    %v1241 = vpop.f32.mrf.mxu0
    %1242 = vdwg.mxu0
    %v1243 = vmul.f32 %v1235, 0.17677669
    %v1244 = vmul.f32 %v1240, 0.17677669
    %1246 = vrot.lane.b32.xlu0 %v1235, 96
    %v1247 = vpop.permute.xlu0 %1246
    %v1249 = vsel %vm122, %v1243, 0
    %v1251 = vsel %vm122, %v1247, 0
    %1253 = vmatprep.subr.mxu0 0.0
    %1254 = vmatpush1.xpose.msra.mxu0 0.0
    %1255 = vmatprep.subr.mxu0 0.0
    %1256 = vmatpush1.xpose.msra.mxu0 0.0
    %1257 = vmatprep.subr.mxu0 0.0
    %1258 = vmatpush1.xpose.msra.mxu0 0.0
    %1259 = vmatprep.subr.mxu0 0.0
    %1260 = vmatpush1.xpose.msra.mxu0 0.0
    %1261 = vmatprep.subr.mxu0 0.0
    %1262 = vmatpush1.xpose.msra.mxu0 0.0
    %1263 = vmatprep.subr.mxu0 0.0
    %1264 = vmatpush1.xpose.msra.mxu0 0.0
    %1265 = vmatprep.subr.mxu0 0.0
    %1266 = vmatpush1.xpose.msra.mxu0 0.0
    %1267 = vmatprep.subr.mxu0 0.0
    %1268 = vmatpush1.xpose.msra.mxu0 0.0
    %1269 = vmatprep.subr.mxu0 0.0
    %1270 = vmatpush1.xpose.msra.mxu0 0.0
    %1271 = vmatprep.subr.mxu0 0.0
    %1272 = vmatpush1.xpose.msra.mxu0 0.0
    %1273 = vmatprep.subr.mxu0 0.0
    %1274 = vmatpush1.xpose.msra.mxu0 0.0
    %1275 = vmatprep.subr.mxu0 0.0
    %1276 = vmatpush1.xpose.msra.mxu0 0.0
    %1277 = vmatprep.subr.mxu0 0.0
    %1278 = vmatpush1.xpose.msra.mxu0 0.0
    %1279 = vmatprep.subr.mxu0 0.0
    %1280 = vmatpush1.xpose.msra.mxu0 0.0
    %1281 = vmatprep.subr.mxu0 0.0
    %1282 = vmatpush1.xpose.msra.mxu0 0.0
    %1283 = vmatprep.subr.mxu0 0.0
    %1284 = vmatpush1.xpose.msra.mxu0 %v1251
    %1285 = vmatprep.subr.mxu0 0.0
    %1286 = vmatpush2.xpose.msra.mxu0 0.0
    %1287 = vmatprep.subr.mxu0 0.0
    %1288 = vmatpush2.xpose.msra.mxu0 0.0
    %1289 = vmatprep.subr.mxu0 0.0
    %1290 = vmatpush2.xpose.msra.mxu0 0.0
    %1291 = vmatprep.subr.mxu0 0.0
    %1292 = vmatpush2.xpose.msra.mxu0 0.0
    %1293 = vmatprep.subr.mxu0 0.0
    %1294 = vmatpush2.xpose.msra.mxu0 0.0
    %1295 = vmatprep.subr.mxu0 0.0
    %1296 = vmatpush2.xpose.msra.mxu0 0.0
    %1297 = vmatprep.subr.mxu0 0.0
    %1298 = vmatpush2.xpose.msra.mxu0 0.0
    %1299 = vmatprep.subr.mxu0 0.0
    %1300 = vmatpush2.xpose.msra.mxu0 0.0
    %1301 = vmatprep.subr.mxu0 0.0
    %1302 = vmatpush2.xpose.msra.mxu0 0.0
    %1303 = vmatprep.subr.mxu0 0.0
    %1304 = vmatpush2.xpose.msra.mxu0 0.0
    %1305 = vmatprep.subr.mxu0 0.0
    %1306 = vmatpush2.xpose.msra.mxu0 0.0
    %1307 = vmatprep.subr.mxu0 0.0
    %1308 = vmatpush2.xpose.msra.mxu0 0.0
    %1309 = vmatprep.subr.mxu0 0.0
    %1310 = vmatpush2.xpose.msra.mxu0 0.0
    %1311 = vmatprep.subr.mxu0 0.0
    %1312 = vmatpush2.xpose.msra.mxu0 0.0
    %1313 = vmatprep.subr.mxu0 0.0
    %1314 = vmatpush2.xpose.msra.mxu0 0.0
    %1315 = vmatprep.subr.mxu0 0.0
    %1316 = vmatpush2.xpose.msra.mxu0 0.0
    %1317 = vmatprep.mubr.f32.mxu0 0.0
    %1318 = vmatmul.mubr.f32.gmra.mxu0 %v1249
    %v1319 = vpop.f32.mrf.mxu0
    %v1320 = vadd.f32 0.0, %v1319
    %v1321 = vpop.f32.mrf.mxu0
    %1322 = vdwg.mxu0
    %1324 = vrot.lane.b32.xlu0 %v1240, 96
    %v1325 = vpop.permute.xlu0 %1324
    %v1327 = vsel %vm122, %v1244, 0
    %v1329 = vsel %vm122, %v1325, 0
    %1331 = vmatprep.subr.mxu0 0.0
    %1332 = vmatpush1.xpose.msra.mxu0 0.0
    %1333 = vmatprep.subr.mxu0 0.0
    %1334 = vmatpush1.xpose.msra.mxu0 0.0
    %1335 = vmatprep.subr.mxu0 0.0
    %1336 = vmatpush1.xpose.msra.mxu0 0.0
    %1337 = vmatprep.subr.mxu0 0.0
    %1338 = vmatpush1.xpose.msra.mxu0 0.0
    %1339 = vmatprep.subr.mxu0 0.0
    %1340 = vmatpush1.xpose.msra.mxu0 0.0
    %1341 = vmatprep.subr.mxu0 0.0
    %1342 = vmatpush1.xpose.msra.mxu0 0.0
    %1343 = vmatprep.subr.mxu0 0.0
    %1344 = vmatpush1.xpose.msra.mxu0 0.0
    %1345 = vmatprep.subr.mxu0 0.0
    %1346 = vmatpush1.xpose.msra.mxu0 0.0
    %1347 = vmatprep.subr.mxu0 0.0
    %1348 = vmatpush1.xpose.msra.mxu0 0.0
    %1349 = vmatprep.subr.mxu0 0.0
    %1350 = vmatpush1.xpose.msra.mxu0 0.0
    %1351 = vmatprep.subr.mxu0 0.0
    %1352 = vmatpush1.xpose.msra.mxu0 0.0
    %1353 = vmatprep.subr.mxu0 0.0
    %1354 = vmatpush1.xpose.msra.mxu0 0.0
    %1355 = vmatprep.subr.mxu0 0.0
    %1356 = vmatpush1.xpose.msra.mxu0 0.0
    %1357 = vmatprep.subr.mxu0 0.0
    %1358 = vmatpush1.xpose.msra.mxu0 0.0
    %1359 = vmatprep.subr.mxu0 0.0
    %1360 = vmatpush1.xpose.msra.mxu0 0.0
    %1361 = vmatprep.subr.mxu0 0.0
    %1362 = vmatpush1.xpose.msra.mxu0 %v1329
    %1363 = vmatprep.subr.mxu0 0.0
    %1364 = vmatpush2.xpose.msra.mxu0 0.0
    %1365 = vmatprep.subr.mxu0 0.0
    %1366 = vmatpush2.xpose.msra.mxu0 0.0
    %1367 = vmatprep.subr.mxu0 0.0
    %1368 = vmatpush2.xpose.msra.mxu0 0.0
    %1369 = vmatprep.subr.mxu0 0.0
    %1370 = vmatpush2.xpose.msra.mxu0 0.0
    %1371 = vmatprep.subr.mxu0 0.0
    %1372 = vmatpush2.xpose.msra.mxu0 0.0
    %1373 = vmatprep.subr.mxu0 0.0
    %1374 = vmatpush2.xpose.msra.mxu0 0.0
    %1375 = vmatprep.subr.mxu0 0.0
    %1376 = vmatpush2.xpose.msra.mxu0 0.0
    %1377 = vmatprep.subr.mxu0 0.0
    %1378 = vmatpush2.xpose.msra.mxu0 0.0
    %1379 = vmatprep.subr.mxu0 0.0
    %1380 = vmatpush2.xpose.msra.mxu0 0.0
    %1381 = vmatprep.subr.mxu0 0.0
    %1382 = vmatpush2.xpose.msra.mxu0 0.0
    %1383 = vmatprep.subr.mxu0 0.0
    %1384 = vmatpush2.xpose.msra.mxu0 0.0
    %1385 = vmatprep.subr.mxu0 0.0
    %1386 = vmatpush2.xpose.msra.mxu0 0.0
    %1387 = vmatprep.subr.mxu0 0.0
    %1388 = vmatpush2.xpose.msra.mxu0 0.0
    %1389 = vmatprep.subr.mxu0 0.0
    %1390 = vmatpush2.xpose.msra.mxu0 0.0
    %1391 = vmatprep.subr.mxu0 0.0
    %1392 = vmatpush2.xpose.msra.mxu0 0.0
    %1393 = vmatprep.subr.mxu0 0.0
    %1394 = vmatpush2.xpose.msra.mxu0 0.0
    %1395 = vmatprep.mubr.f32.mxu0 0.0
    %1396 = vmatmul.mubr.f32.gmra.mxu0 %v1327
    %v1397 = vpop.f32.mrf.mxu0
    %v1398 = vadd.f32 0.0, %v1397
    %v1399 = vpop.f32.mrf.mxu0
    %1400 = vdwg.mxu0
    %v1401 = vsel %vm362, %v1320, -inf
    %1402 = vmax.xlane.f32.xlu0 %v1401
    %v1403 = vpop.xlane.xlu0 %1402
    %v1404 = vsel %vm362, %v1398, -inf
    %1405 = vmax.xlane.f32.xlu0 %v1404
    %v1406 = vpop.xlane.xlu0 %1405
    %v1407 = vsub.f32 %v1320, %v1403
    %v1408 = vsub.f32 %v1398, %v1406
    %v1409 = vmul.f32 %v1407, 1.442695
    %v1410 = vpow.pop %v1409
    %v1411 = vmul.f32 %v1408, 1.442695
    %v1412 = vpow.pop %v1411
    %v1413 = vsel %vm362, %v1410, 0.0
    %1414 = vadd.xlane.f32.xlu0 %v1413
    %v1415 = vpop.xlane.xlu0 %1414
    %v1416 = vsel %vm362, %v1412, 0.0
    %1417 = vadd.xlane.f32.xlu0 %v1416
    %v1418 = vpop.xlane.xlu0 %1417
    %v1419 = vrcp.pop %v1415
    %v1420 = vrcp.pop %v1418
    %v1421 = vmul.f32 %v1410, %v1419
    %v1422 = vmul.f32 %v1412, %v1420
    %1423 = vrot.lane.b32.xlu0 %v1235, 64
    %v1424 = vpop.permute.xlu0 %1423
    %v1427 = vsel %vm362, %v1421, 0
    %1429 = vmatprep.subr.mxu0 0.0
    %1430 = vmatpush1.msra.mxu0 0.0
    %1431 = vmatprep.subr.mxu0 0.0
    %1432 = vmatpush1.msra.mxu0 0.0
    %1433 = vmatprep.subr.mxu0 0.0
    %1434 = vmatpush1.msra.mxu0 0.0
    %1435 = vmatprep.subr.mxu0 0.0
    %1436 = vmatpush1.msra.mxu0 0.0
    %1437 = vmatprep.subr.mxu0 0.0
    %1438 = vmatpush1.msra.mxu0 0.0
    %1439 = vmatprep.subr.mxu0 0.0
    %1440 = vmatpush1.msra.mxu0 0.0
    %1441 = vmatprep.subr.mxu0 0.0
    %1442 = vmatpush1.msra.mxu0 0.0
    %1443 = vmatprep.subr.mxu0 0.0
    %1444 = vmatpush1.msra.mxu0 0.0
    %1445 = vmatprep.subr.mxu0 0.0
    %1446 = vmatpush1.msra.mxu0 0.0
    %1447 = vmatprep.subr.mxu0 0.0
    %1448 = vmatpush1.msra.mxu0 0.0
    %1449 = vmatprep.subr.mxu0 0.0
    %1450 = vmatpush1.msra.mxu0 0.0
    %1451 = vmatprep.subr.mxu0 0.0
    %1452 = vmatpush1.msra.mxu0 0.0
    %1453 = vmatprep.subr.mxu0 0.0
    %1454 = vmatpush1.msra.mxu0 0.0
    %1455 = vmatprep.subr.mxu0 0.0
    %1456 = vmatpush1.msra.mxu0 0.0
    %1457 = vmatprep.subr.mxu0 0.0
    %1458 = vmatpush1.msra.mxu0 0.0
    %1459 = vmatprep.subr.mxu0 0.0
    %1460 = vmatpush1.msra.mxu0 %v1424
    %1461 = vmatprep.subr.mxu0 0.0
    %1462 = vmatpush2.msra.mxu0 0.0
    %1463 = vmatprep.subr.mxu0 0.0
    %1464 = vmatpush2.msra.mxu0 0.0
    %1465 = vmatprep.subr.mxu0 0.0
    %1466 = vmatpush2.msra.mxu0 0.0
    %1467 = vmatprep.subr.mxu0 0.0
    %1468 = vmatpush2.msra.mxu0 0.0
    %1469 = vmatprep.subr.mxu0 0.0
    %1470 = vmatpush2.msra.mxu0 0.0
    %1471 = vmatprep.subr.mxu0 0.0
    %1472 = vmatpush2.msra.mxu0 0.0
    %1473 = vmatprep.subr.mxu0 0.0
    %1474 = vmatpush2.msra.mxu0 0.0
    %1475 = vmatprep.subr.mxu0 0.0
    %1476 = vmatpush2.msra.mxu0 0.0
    %1477 = vmatprep.subr.mxu0 0.0
    %1478 = vmatpush2.msra.mxu0 0.0
    %1479 = vmatprep.subr.mxu0 0.0
    %1480 = vmatpush2.msra.mxu0 0.0
    %1481 = vmatprep.subr.mxu0 0.0
    %1482 = vmatpush2.msra.mxu0 0.0
    %1483 = vmatprep.subr.mxu0 0.0
    %1484 = vmatpush2.msra.mxu0 0.0
    %1485 = vmatprep.subr.mxu0 0.0
    %1486 = vmatpush2.msra.mxu0 0.0
    %1487 = vmatprep.subr.mxu0 0.0
    %1488 = vmatpush2.msra.mxu0 0.0
    %1489 = vmatprep.subr.mxu0 0.0
    %1490 = vmatpush2.msra.mxu0 0.0
    %1491 = vmatprep.subr.mxu0 0.0
    %1492 = vmatpush2.msra.mxu0 0.0
    %1493 = vmatprep.mubr.f32.mxu0 0.0
    %1494 = vmatmul.mubr.f32.gmra.mxu0 %v1427
    %v1495 = vpop.f32.mrf.mxu0
    %v1496 = vadd.f32 0.0, %v1495
    %v1497 = vpop.f32.mrf.mxu0
    %1498 = vdwg.mxu0
    %1499 = vrot.lane.b32.xlu0 %v1240, 64
    %v1500 = vpop.permute.xlu0 %1499
    %v1503 = vsel %vm362, %v1422, 0
    %1505 = vmatprep.subr.mxu0 0.0
    %1506 = vmatpush1.msra.mxu0 0.0
    %1507 = vmatprep.subr.mxu0 0.0
    %1508 = vmatpush1.msra.mxu0 0.0
    %1509 = vmatprep.subr.mxu0 0.0
    %1510 = vmatpush1.msra.mxu0 0.0
    %1511 = vmatprep.subr.mxu0 0.0
    %1512 = vmatpush1.msra.mxu0 0.0
    %1513 = vmatprep.subr.mxu0 0.0
    %1514 = vmatpush1.msra.mxu0 0.0
    %1515 = vmatprep.subr.mxu0 0.0
    %1516 = vmatpush1.msra.mxu0 0.0
    %1517 = vmatprep.subr.mxu0 0.0
    %1518 = vmatpush1.msra.mxu0 0.0
    %1519 = vmatprep.subr.mxu0 0.0
    %1520 = vmatpush1.msra.mxu0 0.0
    %1521 = vmatprep.subr.mxu0 0.0
    %1522 = vmatpush1.msra.mxu0 0.0
    %1523 = vmatprep.subr.mxu0 0.0
    %1524 = vmatpush1.msra.mxu0 0.0
    %1525 = vmatprep.subr.mxu0 0.0
    %1526 = vmatpush1.msra.mxu0 0.0
    %1527 = vmatprep.subr.mxu0 0.0
    %1528 = vmatpush1.msra.mxu0 0.0
    %1529 = vmatprep.subr.mxu0 0.0
    %1530 = vmatpush1.msra.mxu0 0.0
    %1531 = vmatprep.subr.mxu0 0.0
    %1532 = vmatpush1.msra.mxu0 0.0
    %1533 = vmatprep.subr.mxu0 0.0
    %1534 = vmatpush1.msra.mxu0 0.0
    %1535 = vmatprep.subr.mxu0 0.0
    %1536 = vmatpush1.msra.mxu0 %v1500
    %1537 = vmatprep.subr.mxu0 0.0
    %1538 = vmatpush2.msra.mxu0 0.0
    %1539 = vmatprep.subr.mxu0 0.0
    %1540 = vmatpush2.msra.mxu0 0.0
    %1541 = vmatprep.subr.mxu0 0.0
    %1542 = vmatpush2.msra.mxu0 0.0
    %1543 = vmatprep.subr.mxu0 0.0
    %1544 = vmatpush2.msra.mxu0 0.0
    %1545 = vmatprep.subr.mxu0 0.0
    %1546 = vmatpush2.msra.mxu0 0.0
    %1547 = vmatprep.subr.mxu0 0.0
    %1548 = vmatpush2.msra.mxu0 0.0
    %1549 = vmatprep.subr.mxu0 0.0
    %1550 = vmatpush2.msra.mxu0 0.0
    %1551 = vmatprep.subr.mxu0 0.0
    %1552 = vmatpush2.msra.mxu0 0.0
    %1553 = vmatprep.subr.mxu0 0.0
    %1554 = vmatpush2.msra.mxu0 0.0
    %1555 = vmatprep.subr.mxu0 0.0
    %1556 = vmatpush2.msra.mxu0 0.0
    %1557 = vmatprep.subr.mxu0 0.0
    %1558 = vmatpush2.msra.mxu0 0.0
    %1559 = vmatprep.subr.mxu0 0.0
    %1560 = vmatpush2.msra.mxu0 0.0
    %1561 = vmatprep.subr.mxu0 0.0
    %1562 = vmatpush2.msra.mxu0 0.0
    %1563 = vmatprep.subr.mxu0 0.0
    %1564 = vmatpush2.msra.mxu0 0.0
    %1565 = vmatprep.subr.mxu0 0.0
    %1566 = vmatpush2.msra.mxu0 0.0
    %1567 = vmatprep.subr.mxu0 0.0
    %1568 = vmatpush2.msra.mxu0 0.0
    %1569 = vmatprep.mubr.f32.mxu0 0.0
    %1570 = vmatmul.mubr.f32.gmra.mxu0 %v1503
    %v1571 = vpop.f32.mrf.mxu0
    %v1572 = vadd.f32 0.0, %v1571
    %v1573 = vpop.f32.mrf.mxu0
    %1574 = vdwg.mxu0
    %s1575 = scalar_lea.vmem %s3, 32
    %v1576 = vld [vmem:[%s1575] sm:$0xff]
    %v1577 = vld [vmem:[%s1575 + $0x8] sm:$0xff]
    %v1578 = vld [vmem:[%s1575 + $0x10] sm:$0xff]
    %v1579 = vld [vmem:[%s1575 + $0x18] sm:$0xff]
    %s1580 = scalar_lea.vmem %s4, 1
    %v1581 = vld [vmem:[%s1580] sm:$0x1]
    %v1583 = vlaneseq
    %v1584 = vshrl.u32 %v1583, 7
    %v1585 = vsub.s32 0, %v1584
    %v1586 = vrot.slane %v1581, %v1585
    %v1589 = vsel %vm122, %v1496, 0
    %v1592 = vsel %vm122, %v1572, 0
    %1594 = vmatprep.subr.mxu0 0.0
    %1595 = vmatpush1.msra.mxu0 0.0
    %1596 = vmatprep.subr.mxu0 0.0
    %1597 = vmatpush1.msra.mxu0 0.0
    %1598 = vmatprep.subr.mxu0 0.0
    %1599 = vmatpush1.msra.mxu0 0.0
    %1600 = vmatprep.subr.mxu0 0.0
    %1601 = vmatpush1.msra.mxu0 0.0
    %1602 = vmatprep.subr.mxu0 0.0
    %1603 = vmatpush1.msra.mxu0 0.0
    %1604 = vmatprep.subr.mxu0 0.0
    %1605 = vmatpush1.msra.mxu0 0.0
    %1606 = vmatprep.subr.mxu0 0.0
    %1607 = vmatpush1.msra.mxu0 0.0
    %1608 = vmatprep.subr.mxu0 0.0
    %1609 = vmatpush1.msra.mxu0 0.0
    %1610 = vmatprep.subr.mxu0 0.0
    %1611 = vmatpush1.msra.mxu0 0.0
    %1612 = vmatprep.subr.mxu0 0.0
    %1613 = vmatpush1.msra.mxu0 0.0
    %1614 = vmatprep.subr.mxu0 0.0
    %1615 = vmatpush1.msra.mxu0 0.0
    %1616 = vmatprep.subr.mxu0 0.0
    %1617 = vmatpush1.msra.mxu0 0.0
    %1618 = vmatprep.subr.mxu0 0.0
    %1619 = vmatpush1.msra.mxu0 %v1579
    %1620 = vmatprep.subr.mxu0 0.0
    %1621 = vmatpush1.msra.mxu0 %v1578
    %1622 = vmatprep.subr.mxu0 0.0
    %1623 = vmatpush1.msra.mxu0 %v1577
    %1624 = vmatprep.subr.mxu0 0.0
    %1625 = vmatpush1.msra.mxu0 %v1576
    %1626 = vmatprep.subr.mxu0 0.0
    %1627 = vmatpush2.msra.mxu0 0.0
    %1628 = vmatprep.subr.mxu0 0.0
    %1629 = vmatpush2.msra.mxu0 0.0
    %1630 = vmatprep.subr.mxu0 0.0
    %1631 = vmatpush2.msra.mxu0 0.0
    %1632 = vmatprep.subr.mxu0 0.0
    %1633 = vmatpush2.msra.mxu0 0.0
    %1634 = vmatprep.subr.mxu0 0.0
    %1635 = vmatpush2.msra.mxu0 0.0
    %1636 = vmatprep.subr.mxu0 0.0
    %1637 = vmatpush2.msra.mxu0 0.0
    %1638 = vmatprep.subr.mxu0 0.0
    %1639 = vmatpush2.msra.mxu0 0.0
    %1640 = vmatprep.subr.mxu0 0.0
    %1641 = vmatpush2.msra.mxu0 0.0
    %1642 = vmatprep.subr.mxu0 0.0
    %1643 = vmatpush2.msra.mxu0 0.0
    %1644 = vmatprep.subr.mxu0 0.0
    %1645 = vmatpush2.msra.mxu0 0.0
    %1646 = vmatprep.subr.mxu0 0.0
    %1647 = vmatpush2.msra.mxu0 0.0
    %1648 = vmatprep.subr.mxu0 0.0
    %1649 = vmatpush2.msra.mxu0 0.0
    %1650 = vmatprep.subr.mxu0 0.0
    %1651 = vmatpush2.msra.mxu0 0.0
    %1652 = vmatprep.subr.mxu0 0.0
    %1653 = vmatpush2.msra.mxu0 0.0
    %1654 = vmatprep.subr.mxu0 0.0
    %1655 = vmatpush2.msra.mxu0 0.0
    %1656 = vmatprep.subr.mxu0 0.0
    %1657 = vmatpush2.msra.mxu0 0.0
    %1658 = vmatprep.mubr.f32.mxu0 0.0
    %1659 = vmatmul.mubr.f32.gmra.mxu0 %v1589
    %v1660 = vpop.f32.mrf.mxu0
    %v1661 = vadd.f32 %v1586, %v1660
    %v1662 = vpop.f32.mrf.mxu0
    %1663 = vmatprep.mubr.f32.mxu0 0.0
    %1664 = vmatmul.mubr.f32.gmra.mxu0 %v1592
    %v1665 = vpop.f32.mrf.mxu0
    %v1666 = vadd.f32 %v1586, %v1665
    %v1667 = vpop.f32.mrf.mxu0
    %1668 = vdwg.mxu0
    %v1669 = vadd.f32 %v1147, %v1661
    %v1670 = vadd.f32 %v1148, %v1666
    %s1671 = scalar_lea.vmem %s5, 1
    %v1672 = vld [vmem:[%s1671] sm:$0x1]
    %s1673 = scalar_lea.vmem %s6, 1
    %v1674 = vld [vmem:[%s1673] sm:$0x1]
    %v1675 = vsel %vm122, %v1669, 0.0
    %1676 = vadd.xlane.f32.xlu0 %v1675
    %v1677 = vpop.xlane.xlu0 %1676
    %v1678 = vsel %vm122, %v1670, 0.0
    %1679 = vadd.xlane.f32.xlu0 %v1678
    %v1680 = vpop.xlane.xlu0 %1679
    %v1681 = vmul.f32 %v1677, %v639
    %v1682 = vmul.f32 %v1680, %v639
    %v1683 = vsub.f32 %v1669, %v1681
    %v1684 = vsub.f32 %v1670, %v1682
    %v1685 = vmul.f32 %v1683, %v1683
    %v1686 = vmul.f32 %v1684, %v1684
    %v1687 = vsel %vm122, %v1685, 0.0
    %1688 = vadd.xlane.f32.xlu0 %v1687
    %v1689 = vpop.xlane.xlu0 %1688
    %v1690 = vsel %vm122, %v1686, 0.0
    %1691 = vadd.xlane.f32.xlu0 %v1690
    %v1692 = vpop.xlane.xlu0 %1691
    %v1693 = vmul.f32 %v1689, %v639
    %v1694 = vmul.f32 %v1692, %v639
    %v1695 = vadd.f32 %v1693, 1e-05
    %v1696 = vadd.f32 %v1694, 1e-05
    %v1697 = vrsqrt.pop %v1695
    %v1698 = vrsqrt.pop %v1696
    %v1699 = vmul.f32 %v1683, %v1697
    %v1700 = vmul.f32 %v1684, %v1698
    %v1702 = vlaneseq
    %v1703 = vshrl.u32 %v1702, 7
    %v1704 = vsub.s32 0, %v1703
    %v1705 = vrot.slane %v1672, %v1704
    %v1707 = vmul.f32 %v1699, %v1705
    %v1708 = vmul.f32 %v1700, %v1705
    %v1710 = vlaneseq
    %v1711 = vshrl.u32 %v1710, 7
    %v1712 = vsub.s32 0, %v1711
    %v1713 = vrot.slane %v1674, %v1712
    %v1715 = vadd.f32 %v1707, %v1713
    %v1716 = vadd.f32 %v1708, %v1713
    %s1717 = scalar_lea.vmem %s7, 128
    %v1718 = vld [vmem:[%s1717] sm:$0xff]
    %v1719 = vld [vmem:[%s1717 + $0x8] sm:$0xff]
    %v1720 = vld [vmem:[%s1717 + $0x10] sm:$0xff]
    %v1721 = vld [vmem:[%s1717 + $0x18] sm:$0xff]
    %v1722 = vld [vmem:[%s1717 + $0x20] sm:$0xff]
    %v1723 = vld [vmem:[%s1717 + $0x28] sm:$0xff]
    %v1724 = vld [vmem:[%s1717 + $0x30] sm:$0xff]
    %v1725 = vld [vmem:[%s1717 + $0x38] sm:$0xff]
    %v1726 = vld [vmem:[%s1717 + $0x40] sm:$0xff]
    %v1727 = vld [vmem:[%s1717 + $0x48] sm:$0xff]
    %v1728 = vld [vmem:[%s1717 + $0x50] sm:$0xff]
    %v1729 = vld [vmem:[%s1717 + $0x58] sm:$0xff]
    %v1730 = vld [vmem:[%s1717 + $0x60] sm:$0xff]
    %v1731 = vld [vmem:[%s1717 + $0x68] sm:$0xff]
    %v1732 = vld [vmem:[%s1717 + $0x70] sm:$0xff]
    %v1733 = vld [vmem:[%s1717 + $0x78] sm:$0xff]
    %s1734 = scalar_lea.vmem %s8, 4
    %v1735 = vld [vmem:[%s1734] sm:$0xf]
    %v1737 = vlaneseq
    %v1738 = vshrl.u32 %v1737, 7
    %v1739 = vsub.s32 0, %v1738
    %v1740 = vrot.slane %v1735, %v1739
    %v1741 = vlaneseq
    %v1742 = vshrl.u32 %v1741, 7
    %v1743 = vsub.s32 1, %v1742
    %v1744 = vrot.slane %v1735, %v1743
    %v1745 = vlaneseq
    %v1746 = vshrl.u32 %v1745, 7
    %v1747 = vsub.s32 2, %v1746
    %v1748 = vrot.slane %v1735, %v1747
    %v1749 = vlaneseq
    %v1750 = vshrl.u32 %v1749, 7
    %v1751 = vsub.s32 3, %v1750
    %v1752 = vrot.slane %v1735, %v1751
    %v1758 = vsel %vm122, %v1715, 0
    %v1761 = vsel %vm122, %v1716, 0
    %1763 = vmatprep.subr.mxu0 0.0
    %1764 = vmatpush1.msra.mxu0 0.0
    %1765 = vmatprep.subr.mxu0 0.0
    %1766 = vmatpush1.msra.mxu0 0.0
    %1767 = vmatprep.subr.mxu0 0.0
    %1768 = vmatpush1.msra.mxu0 0.0
    %1769 = vmatprep.subr.mxu0 0.0
    %1770 = vmatpush1.msra.mxu0 0.0
    %1771 = vmatprep.subr.mxu0 0.0
    %1772 = vmatpush1.msra.mxu0 0.0
    %1773 = vmatprep.subr.mxu0 0.0
    %1774 = vmatpush1.msra.mxu0 0.0
    %1775 = vmatprep.subr.mxu0 0.0
    %1776 = vmatpush1.msra.mxu0 0.0
    %1777 = vmatprep.subr.mxu0 0.0
    %1778 = vmatpush1.msra.mxu0 0.0
    %1779 = vmatprep.subr.mxu0 0.0
    %1780 = vmatpush1.msra.mxu0 0.0
    %1781 = vmatprep.subr.mxu0 0.0
    %1782 = vmatpush1.msra.mxu0 0.0
    %1783 = vmatprep.subr.mxu0 0.0
    %1784 = vmatpush1.msra.mxu0 0.0
    %1785 = vmatprep.subr.mxu0 0.0
    %1786 = vmatpush1.msra.mxu0 0.0
    %1787 = vmatprep.subr.mxu0 %v1731
    %1788 = vmatpush1.msra.mxu0 %v1730
    %1789 = vmatprep.subr.mxu0 %v1727
    %1790 = vmatpush1.msra.mxu0 %v1726
    %1791 = vmatprep.subr.mxu0 %v1723
    %1792 = vmatpush1.msra.mxu0 %v1722
    %1793 = vmatprep.subr.mxu0 %v1719
    %1794 = vmatpush1.msra.mxu0 %v1718
    %1795 = vmatprep.subr.mxu0 0.0
    %1796 = vmatpush2.msra.mxu0 0.0
    %1797 = vmatprep.subr.mxu0 0.0
    %1798 = vmatpush2.msra.mxu0 0.0
    %1799 = vmatprep.subr.mxu0 0.0
    %1800 = vmatpush2.msra.mxu0 0.0
    %1801 = vmatprep.subr.mxu0 0.0
    %1802 = vmatpush2.msra.mxu0 0.0
    %1803 = vmatprep.subr.mxu0 0.0
    %1804 = vmatpush2.msra.mxu0 0.0
    %1805 = vmatprep.subr.mxu0 0.0
    %1806 = vmatpush2.msra.mxu0 0.0
    %1807 = vmatprep.subr.mxu0 0.0
    %1808 = vmatpush2.msra.mxu0 0.0
    %1809 = vmatprep.subr.mxu0 0.0
    %1810 = vmatpush2.msra.mxu0 0.0
    %1811 = vmatprep.subr.mxu0 0.0
    %1812 = vmatpush2.msra.mxu0 0.0
    %1813 = vmatprep.subr.mxu0 0.0
    %1814 = vmatpush2.msra.mxu0 0.0
    %1815 = vmatprep.subr.mxu0 0.0
    %1816 = vmatpush2.msra.mxu0 0.0
    %1817 = vmatprep.subr.mxu0 0.0
    %1818 = vmatpush2.msra.mxu0 0.0
    %1819 = vmatprep.subr.mxu0 0.0
    %1820 = vmatpush2.msra.mxu0 0.0
    %1821 = vmatprep.subr.mxu0 0.0
    %1822 = vmatpush2.msra.mxu0 0.0
    %1823 = vmatprep.subr.mxu0 0.0
    %1824 = vmatpush2.msra.mxu0 0.0
    %1825 = vmatprep.subr.mxu0 0.0
    %1826 = vmatpush2.msra.mxu0 0.0
    %1827 = vmatprep.mubr.f32.mxu0 0.0
    %1828 = vmatmul.mubr.f32.gmra.mxu0 %v1758
    %v1829 = vpop.f32.mrf.mxu0
    %v1830 = vadd.f32 %v1740, %v1829
    %v1831 = vpop.f32.mrf.mxu0
    %v1832 = vadd.f32 %v1744, %v1831
    %1833 = vmatprep.mubr.f32.mxu0 0.0
    %1834 = vmatmul.mubr.f32.gmra.mxu0 %v1761
    %v1835 = vpop.f32.mrf.mxu0
    %v1836 = vadd.f32 %v1740, %v1835
    %v1837 = vpop.f32.mrf.mxu0
    %v1838 = vadd.f32 %v1744, %v1837
    %1839 = vdwg.mxu0
    %1840 = vmatprep.subr.mxu0 0.0
    %1841 = vmatpush1.msra.mxu0 0.0
    %1842 = vmatprep.subr.mxu0 0.0
    %1843 = vmatpush1.msra.mxu0 0.0
    %1844 = vmatprep.subr.mxu0 0.0
    %1845 = vmatpush1.msra.mxu0 0.0
    %1846 = vmatprep.subr.mxu0 0.0
    %1847 = vmatpush1.msra.mxu0 0.0
    %1848 = vmatprep.subr.mxu0 0.0
    %1849 = vmatpush1.msra.mxu0 0.0
    %1850 = vmatprep.subr.mxu0 0.0
    %1851 = vmatpush1.msra.mxu0 0.0
    %1852 = vmatprep.subr.mxu0 0.0
    %1853 = vmatpush1.msra.mxu0 0.0
    %1854 = vmatprep.subr.mxu0 0.0
    %1855 = vmatpush1.msra.mxu0 0.0
    %1856 = vmatprep.subr.mxu0 0.0
    %1857 = vmatpush1.msra.mxu0 0.0
    %1858 = vmatprep.subr.mxu0 0.0
    %1859 = vmatpush1.msra.mxu0 0.0
    %1860 = vmatprep.subr.mxu0 0.0
    %1861 = vmatpush1.msra.mxu0 0.0
    %1862 = vmatprep.subr.mxu0 0.0
    %1863 = vmatpush1.msra.mxu0 0.0
    %1864 = vmatprep.subr.mxu0 %v1733
    %1865 = vmatpush1.msra.mxu0 %v1732
    %1866 = vmatprep.subr.mxu0 %v1729
    %1867 = vmatpush1.msra.mxu0 %v1728
    %1868 = vmatprep.subr.mxu0 %v1725
    %1869 = vmatpush1.msra.mxu0 %v1724
    %1870 = vmatprep.subr.mxu0 %v1721
    %1871 = vmatpush1.msra.mxu0 %v1720
    %1872 = vmatprep.subr.mxu0 0.0
    %1873 = vmatpush2.msra.mxu0 0.0
    %1874 = vmatprep.subr.mxu0 0.0
    %1875 = vmatpush2.msra.mxu0 0.0
    %1876 = vmatprep.subr.mxu0 0.0
    %1877 = vmatpush2.msra.mxu0 0.0
    %1878 = vmatprep.subr.mxu0 0.0
    %1879 = vmatpush2.msra.mxu0 0.0
    %1880 = vmatprep.subr.mxu0 0.0
    %1881 = vmatpush2.msra.mxu0 0.0
    %1882 = vmatprep.subr.mxu0 0.0
    %1883 = vmatpush2.msra.mxu0 0.0
    %1884 = vmatprep.subr.mxu0 0.0
    %1885 = vmatpush2.msra.mxu0 0.0
    %1886 = vmatprep.subr.mxu0 0.0
    %1887 = vmatpush2.msra.mxu0 0.0
    %1888 = vmatprep.subr.mxu0 0.0
    %1889 = vmatpush2.msra.mxu0 0.0
    %1890 = vmatprep.subr.mxu0 0.0
    %1891 = vmatpush2.msra.mxu0 0.0
    %1892 = vmatprep.subr.mxu0 0.0
    %1893 = vmatpush2.msra.mxu0 0.0
    %1894 = vmatprep.subr.mxu0 0.0
    %1895 = vmatpush2.msra.mxu0 0.0
    %1896 = vmatprep.subr.mxu0 0.0
    %1897 = vmatpush2.msra.mxu0 0.0
    %1898 = vmatprep.subr.mxu0 0.0
    %1899 = vmatpush2.msra.mxu0 0.0
    %1900 = vmatprep.subr.mxu0 0.0
    %1901 = vmatpush2.msra.mxu0 0.0
    %1902 = vmatprep.subr.mxu0 0.0
    %1903 = vmatpush2.msra.mxu0 0.0
    %1904 = vmatprep.mubr.f32.mxu0 0.0
    %1905 = vmatmul.mubr.f32.gmra.mxu0 %v1758
    %v1906 = vpop.f32.mrf.mxu0
    %v1907 = vadd.f32 %v1748, %v1906
    %v1908 = vpop.f32.mrf.mxu0
    %v1909 = vadd.f32 %v1752, %v1908
    %1910 = vmatprep.mubr.f32.mxu0 0.0
    %1911 = vmatmul.mubr.f32.gmra.mxu0 %v1761
    %v1912 = vpop.f32.mrf.mxu0
    %v1913 = vadd.f32 %v1748, %v1912
    %v1914 = vpop.f32.mrf.mxu0
    %v1915 = vadd.f32 %v1752, %v1914
    %1916 = vdwg.mxu0
    %v1917 = vmax.f32 %v1830, 0.0
    %v1918 = vmax.f32 %v1832, 0.0
    %v1919 = vmax.f32 %v1907, 0.0
    %v1920 = vmax.f32 %v1909, 0.0
    %v1921 = vmax.f32 %v1836, 0.0
    %v1922 = vmax.f32 %v1838, 0.0
    %v1923 = vmax.f32 %v1913, 0.0
    %v1924 = vmax.f32 %v1915, 0.0
    %s1925 = scalar_lea.vmem %s9, 512
    %v1926 = vld [vmem:[%s1925] sm:$0xff]
    %v1927 = vld [vmem:[%s1925 + $0x8] sm:$0xff]
    %v1928 = vld [vmem:[%s1925 + $0x10] sm:$0xff]
    %v1929 = vld [vmem:[%s1925 + $0x18] sm:$0xff]
    %v1930 = vld [vmem:[%s1925 + $0x20] sm:$0xff]
    %v1931 = vld [vmem:[%s1925 + $0x28] sm:$0xff]
    %v1932 = vld [vmem:[%s1925 + $0x30] sm:$0xff]
    %v1933 = vld [vmem:[%s1925 + $0x38] sm:$0xff]
    %v1934 = vld [vmem:[%s1925 + $0x40] sm:$0xff]
    %v1935 = vld [vmem:[%s1925 + $0x48] sm:$0xff]
    %v1936 = vld [vmem:[%s1925 + $0x50] sm:$0xff]
    %v1937 = vld [vmem:[%s1925 + $0x58] sm:$0xff]
    %v1938 = vld [vmem:[%s1925 + $0x60] sm:$0xff]
    %v1939 = vld [vmem:[%s1925 + $0x68] sm:$0xff]
    %v1940 = vld [vmem:[%s1925 + $0x70] sm:$0xff]
    %v1941 = vld [vmem:[%s1925 + $0x78] sm:$0xff]
    %v1942 = vld [vmem:[%s1925 + $0x80] sm:$0xff]
    %v1943 = vld [vmem:[%s1925 + $0x88] sm:$0xff]
    %v1944 = vld [vmem:[%s1925 + $0x90] sm:$0xff]
    %v1945 = vld [vmem:[%s1925 + $0x98] sm:$0xff]
    %v1946 = vld [vmem:[%s1925 + $0xa0] sm:$0xff]
    %v1947 = vld [vmem:[%s1925 + $0xa8] sm:$0xff]
    %v1948 = vld [vmem:[%s1925 + $0xb0] sm:$0xff]
    %v1949 = vld [vmem:[%s1925 + $0xb8] sm:$0xff]
    %v1950 = vld [vmem:[%s1925 + $0xc0] sm:$0xff]
    %v1951 = vld [vmem:[%s1925 + $0xc8] sm:$0xff]
    %v1952 = vld [vmem:[%s1925 + $0xd0] sm:$0xff]
    %v1953 = vld [vmem:[%s1925 + $0xd8] sm:$0xff]
    %v1954 = vld [vmem:[%s1925 + $0xe0] sm:$0xff]
    %v1955 = vld [vmem:[%s1925 + $0xe8] sm:$0xff]
    %v1956 = vld [vmem:[%s1925 + $0xf0] sm:$0xff]
    %v1957 = vld [vmem:[%s1925 + $0xf8] sm:$0xff]
    %v1958 = vld [vmem:[%s1925 + $0x100] sm:$0xff]
    %v1959 = vld [vmem:[%s1925 + $0x108] sm:$0xff]
    %v1960 = vld [vmem:[%s1925 + $0x110] sm:$0xff]
    %v1961 = vld [vmem:[%s1925 + $0x118] sm:$0xff]
    %v1962 = vld [vmem:[%s1925 + $0x120] sm:$0xff]
    %v1963 = vld [vmem:[%s1925 + $0x128] sm:$0xff]
    %v1964 = vld [vmem:[%s1925 + $0x130] sm:$0xff]
    %v1965 = vld [vmem:[%s1925 + $0x138] sm:$0xff]
    %v1966 = vld [vmem:[%s1925 + $0x140] sm:$0xff]
    %v1967 = vld [vmem:[%s1925 + $0x148] sm:$0xff]
    %v1968 = vld [vmem:[%s1925 + $0x150] sm:$0xff]
    %v1969 = vld [vmem:[%s1925 + $0x158] sm:$0xff]
    %v1970 = vld [vmem:[%s1925 + $0x160] sm:$0xff]
    %v1971 = vld [vmem:[%s1925 + $0x168] sm:$0xff]
    %v1972 = vld [vmem:[%s1925 + $0x170] sm:$0xff]
    %v1973 = vld [vmem:[%s1925 + $0x178] sm:$0xff]
    %v1974 = vld [vmem:[%s1925 + $0x180] sm:$0xff]
    %v1975 = vld [vmem:[%s1925 + $0x188] sm:$0xff]
    %v1976 = vld [vmem:[%s1925 + $0x190] sm:$0xff]
    %v1977 = vld [vmem:[%s1925 + $0x198] sm:$0xff]
    %v1978 = vld [vmem:[%s1925 + $0x1a0] sm:$0xff]
    %v1979 = vld [vmem:[%s1925 + $0x1a8] sm:$0xff]
    %v1980 = vld [vmem:[%s1925 + $0x1b0] sm:$0xff]
    %v1981 = vld [vmem:[%s1925 + $0x1b8] sm:$0xff]
    %v1982 = vld [vmem:[%s1925 + $0x1c0] sm:$0xff]
    %v1983 = vld [vmem:[%s1925 + $0x1c8] sm:$0xff]
    %v1984 = vld [vmem:[%s1925 + $0x1d0] sm:$0xff]
    %v1985 = vld [vmem:[%s1925 + $0x1d8] sm:$0xff]
    %v1986 = vld [vmem:[%s1925 + $0x1e0] sm:$0xff]
    %v1987 = vld [vmem:[%s1925 + $0x1e8] sm:$0xff]
    %v1988 = vld [vmem:[%s1925 + $0x1f0] sm:$0xff]
    %v1989 = vld [vmem:[%s1925 + $0x1f8] sm:$0xff]
    %s1990 = scalar_lea.vmem %s10, 1
    %v1991 = vld [vmem:[%s1990] sm:$0x1]
    %v1993 = vlaneseq
    %v1994 = vshrl.u32 %v1993, 7
    %v1995 = vsub.s32 0, %v1994
    %v1996 = vrot.slane %v1991, %v1995
    %1998 = vmatprep.subr.mxu0 0.0
    %1999 = vmatpush1.msra.mxu0 %v1941
    %2000 = vmatprep.subr.mxu0 0.0
    %2001 = vmatpush1.msra.mxu0 %v1940
    %2002 = vmatprep.subr.mxu0 0.0
    %2003 = vmatpush1.msra.mxu0 %v1939
    %2004 = vmatprep.subr.mxu0 0.0
    %2005 = vmatpush1.msra.mxu0 %v1938
    %2006 = vmatprep.subr.mxu0 0.0
    %2007 = vmatpush1.msra.mxu0 %v1937
    %2008 = vmatprep.subr.mxu0 0.0
    %2009 = vmatpush1.msra.mxu0 %v1936
    %2010 = vmatprep.subr.mxu0 0.0
    %2011 = vmatpush1.msra.mxu0 %v1935
    %2012 = vmatprep.subr.mxu0 0.0
    %2013 = vmatpush1.msra.mxu0 %v1934
    %2014 = vmatprep.subr.mxu0 0.0
    %2015 = vmatpush1.msra.mxu0 %v1933
    %2016 = vmatprep.subr.mxu0 0.0
    %2017 = vmatpush1.msra.mxu0 %v1932
    %2018 = vmatprep.subr.mxu0 0.0
    %2019 = vmatpush1.msra.mxu0 %v1931
    %2020 = vmatprep.subr.mxu0 0.0
    %2021 = vmatpush1.msra.mxu0 %v1930
    %2022 = vmatprep.subr.mxu0 0.0
    %2023 = vmatpush1.msra.mxu0 %v1929
    %2024 = vmatprep.subr.mxu0 0.0
    %2025 = vmatpush1.msra.mxu0 %v1928
    %2026 = vmatprep.subr.mxu0 0.0
    %2027 = vmatpush1.msra.mxu0 %v1927
    %2028 = vmatprep.subr.mxu0 0.0
    %2029 = vmatpush1.msra.mxu0 %v1926
    %2030 = vmatprep.subr.mxu0 0.0
    %2031 = vmatpush2.msra.mxu0 %v1957
    %2032 = vmatprep.subr.mxu0 0.0
    %2033 = vmatpush2.msra.mxu0 %v1956
    %2034 = vmatprep.subr.mxu0 0.0
    %2035 = vmatpush2.msra.mxu0 %v1955
    %2036 = vmatprep.subr.mxu0 0.0
    %2037 = vmatpush2.msra.mxu0 %v1954
    %2038 = vmatprep.subr.mxu0 0.0
    %2039 = vmatpush2.msra.mxu0 %v1953
    %2040 = vmatprep.subr.mxu0 0.0
    %2041 = vmatpush2.msra.mxu0 %v1952
    %2042 = vmatprep.subr.mxu0 0.0
    %2043 = vmatpush2.msra.mxu0 %v1951
    %2044 = vmatprep.subr.mxu0 0.0
    %2045 = vmatpush2.msra.mxu0 %v1950
    %2046 = vmatprep.subr.mxu0 0.0
    %2047 = vmatpush2.msra.mxu0 %v1949
    %2048 = vmatprep.subr.mxu0 0.0
    %2049 = vmatpush2.msra.mxu0 %v1948
    %2050 = vmatprep.subr.mxu0 0.0
    %2051 = vmatpush2.msra.mxu0 %v1947
    %2052 = vmatprep.subr.mxu0 0.0
    %2053 = vmatpush2.msra.mxu0 %v1946
    %2054 = vmatprep.subr.mxu0 0.0
    %2055 = vmatpush2.msra.mxu0 %v1945
    %2056 = vmatprep.subr.mxu0 0.0
    %2057 = vmatpush2.msra.mxu0 %v1944
    %2058 = vmatprep.subr.mxu0 0.0
    %2059 = vmatpush2.msra.mxu0 %v1943
    %2060 = vmatprep.subr.mxu0 0.0
    %2061 = vmatpush2.msra.mxu0 %v1942
    %2062 = vmatprep.mubr.f32.mxu0 %v1918
    %2063 = vmatmul.mubr.f32.gmra.mxu0 %v1917
    %v2064 = vpop.f32.mrf.mxu0
    %v2065 = vadd.f32 %v1996, %v2064
    %v2066 = vpop.f32.mrf.mxu0
    %2067 = vmatprep.mubr.f32.mxu0 %v1922
    %2068 = vmatmul.mubr.f32.gmra.mxu0 %v1921
    %v2069 = vpop.f32.mrf.mxu0
    %v2070 = vadd.f32 %v1996, %v2069
    %v2071 = vpop.f32.mrf.mxu0
    %2072 = vdwg.mxu0
    %2073 = vmatprep.subr.mxu0 0.0
    %2074 = vmatpush1.msra.mxu0 %v1973
    %2075 = vmatprep.subr.mxu0 0.0
    %2076 = vmatpush1.msra.mxu0 %v1972
    %2077 = vmatprep.subr.mxu0 0.0
    %2078 = vmatpush1.msra.mxu0 %v1971
    %2079 = vmatprep.subr.mxu0 0.0
    %2080 = vmatpush1.msra.mxu0 %v1970
    %2081 = vmatprep.subr.mxu0 0.0
    %2082 = vmatpush1.msra.mxu0 %v1969
    %2083 = vmatprep.subr.mxu0 0.0
    %2084 = vmatpush1.msra.mxu0 %v1968
    %2085 = vmatprep.subr.mxu0 0.0
    %2086 = vmatpush1.msra.mxu0 %v1967
    %2087 = vmatprep.subr.mxu0 0.0
    %2088 = vmatpush1.msra.mxu0 %v1966
    %2089 = vmatprep.subr.mxu0 0.0
    %2090 = vmatpush1.msra.mxu0 %v1965
    %2091 = vmatprep.subr.mxu0 0.0
    %2092 = vmatpush1.msra.mxu0 %v1964
    %2093 = vmatprep.subr.mxu0 0.0
    %2094 = vmatpush1.msra.mxu0 %v1963
    %2095 = vmatprep.subr.mxu0 0.0
    %2096 = vmatpush1.msra.mxu0 %v1962
    %2097 = vmatprep.subr.mxu0 0.0
    %2098 = vmatpush1.msra.mxu0 %v1961
    %2099 = vmatprep.subr.mxu0 0.0
    %2100 = vmatpush1.msra.mxu0 %v1960
    %2101 = vmatprep.subr.mxu0 0.0
    %2102 = vmatpush1.msra.mxu0 %v1959
    %2103 = vmatprep.subr.mxu0 0.0
    %2104 = vmatpush1.msra.mxu0 %v1958
    %2105 = vmatprep.subr.mxu0 0.0
    %2106 = vmatpush2.msra.mxu0 %v1989
    %2107 = vmatprep.subr.mxu0 0.0
    %2108 = vmatpush2.msra.mxu0 %v1988
    %2109 = vmatprep.subr.mxu0 0.0
    %2110 = vmatpush2.msra.mxu0 %v1987
    %2111 = vmatprep.subr.mxu0 0.0
    %2112 = vmatpush2.msra.mxu0 %v1986
    %2113 = vmatprep.subr.mxu0 0.0
    %2114 = vmatpush2.msra.mxu0 %v1985
    %2115 = vmatprep.subr.mxu0 0.0
    %2116 = vmatpush2.msra.mxu0 %v1984
    %2117 = vmatprep.subr.mxu0 0.0
    %2118 = vmatpush2.msra.mxu0 %v1983
    %2119 = vmatprep.subr.mxu0 0.0
    %2120 = vmatpush2.msra.mxu0 %v1982
    %2121 = vmatprep.subr.mxu0 0.0
    %2122 = vmatpush2.msra.mxu0 %v1981
    %2123 = vmatprep.subr.mxu0 0.0
    %2124 = vmatpush2.msra.mxu0 %v1980
    %2125 = vmatprep.subr.mxu0 0.0
    %2126 = vmatpush2.msra.mxu0 %v1979
    %2127 = vmatprep.subr.mxu0 0.0
    %2128 = vmatpush2.msra.mxu0 %v1978
    %2129 = vmatprep.subr.mxu0 0.0
    %2130 = vmatpush2.msra.mxu0 %v1977
    %2131 = vmatprep.subr.mxu0 0.0
    %2132 = vmatpush2.msra.mxu0 %v1976
    %2133 = vmatprep.subr.mxu0 0.0
    %2134 = vmatpush2.msra.mxu0 %v1975
    %2135 = vmatprep.subr.mxu0 0.0
    %2136 = vmatpush2.msra.mxu0 %v1974
    %2137 = vmatprep.mubr.f32.mxu0 %v1920
    %2138 = vmatmul.mubr.f32.gmra.mxu0 %v1919
    %v2139 = vpop.f32.mrf.mxu0
    %v2140 = vadd.f32 %v2065, %v2139
    %v2141 = vpop.f32.mrf.mxu0
    %2142 = vmatprep.mubr.f32.mxu0 %v1924
    %2143 = vmatmul.mubr.f32.gmra.mxu0 %v1923
    %v2144 = vpop.f32.mrf.mxu0
    %v2145 = vadd.f32 %v2070, %v2144
    %v2146 = vpop.f32.mrf.mxu0
    %2147 = vdwg.mxu0
    %v2148 = vadd.f32 %v1715, %v2140
    %v2149 = vadd.f32 %v1716, %v2145
    %s2150 = scalar_lea.vmem %s11, 1
    %v2151 = vld [vmem:[%s2150] sm:$0x1]
    %s2152 = scalar_lea.vmem %s12, 1
    %v2153 = vld [vmem:[%s2152] sm:$0x1]
    %v2154 = vsel %vm122, %v2148, 0.0
    %2155 = vadd.xlane.f32.xlu0 %v2154
    %v2156 = vpop.xlane.xlu0 %2155
    %v2157 = vsel %vm122, %v2149, 0.0
    %2158 = vadd.xlane.f32.xlu0 %v2157
    %v2159 = vpop.xlane.xlu0 %2158
    %v2160 = vmul.f32 %v2156, %v639
    %v2161 = vmul.f32 %v2159, %v639
    %v2162 = vsub.f32 %v2148, %v2160
    %v2163 = vsub.f32 %v2149, %v2161
    %v2164 = vmul.f32 %v2162, %v2162
    %v2165 = vmul.f32 %v2163, %v2163
    %v2166 = vsel %vm122, %v2164, 0.0
    %2167 = vadd.xlane.f32.xlu0 %v2166
    %v2168 = vpop.xlane.xlu0 %2167
    %v2169 = vsel %vm122, %v2165, 0.0
    %2170 = vadd.xlane.f32.xlu0 %v2169
    %v2171 = vpop.xlane.xlu0 %2170
    %v2172 = vmul.f32 %v2168, %v639
    %v2173 = vmul.f32 %v2171, %v639
    %v2174 = vadd.f32 %v2172, 1e-05
    %v2175 = vadd.f32 %v2173, 1e-05
    %v2176 = vrsqrt.pop %v2174
    %v2177 = vrsqrt.pop %v2175
    %v2178 = vmul.f32 %v2162, %v2176
    %v2179 = vmul.f32 %v2163, %v2177
    %v2181 = vlaneseq
    %v2182 = vshrl.u32 %v2181, 7
    %v2183 = vsub.s32 0, %v2182
    %v2184 = vrot.slane %v2151, %v2183
    %v2186 = vmul.f32 %v2178, %v2184
    %v2187 = vmul.f32 %v2179, %v2184
    %v2189 = vlaneseq
    %v2190 = vshrl.u32 %v2189, 7
    %v2191 = vsub.s32 0, %v2190
    %v2192 = vrot.slane %v2153, %v2191
    %v2194 = vadd.f32 %v2186, %v2192
    %v2195 = vadd.f32 %v2187, %v2192
    %v2196 = vcombine.high %v2194, 0.0
    %v2198 = vunpack.c.l.s4 1983009808
    %v2199 = vunpack.c.0.s8 %v2198
    %v2200 = vlaneseq
    %v2201 = vshrl.u32 %v2200, 7
    %v2202 = vsub.s32 %v2199, %v2201
    %v2203 = vrot.slane %v2194, %v2202
    %v2205 = vunpack.c.l.s4 1983009808
    %v2206 = vunpack.c.0.s8 %v2205
    %v2207 = vlaneseq
    %v2208 = vshrl.u32 %v2207, 7
    %v2209 = vsub.s32 %v2206, %v2208
    %v2210 = vrot.slane %v2196, %v2209
    %v2211 = vcombine.high %v2195, 0.0
    %v2213 = vunpack.c.l.s4 1983009808
    %v2214 = vunpack.c.0.s8 %v2213
    %v2215 = vlaneseq
    %v2216 = vshrl.u32 %v2215, 7
    %v2217 = vsub.s32 %v2214, %v2216
    %v2218 = vrot.slane %v2195, %v2217
    %v2220 = vunpack.c.l.s4 1983009808
    %v2221 = vunpack.c.0.s8 %v2220
    %v2222 = vlaneseq
    %v2223 = vshrl.u32 %v2222, 7
    %v2224 = vsub.s32 %v2221, %v2223
    %v2225 = vrot.slane %v2211, %v2224
    %v2226 = vcombine.low %v2203, %v2218
    %v2227 = vcombine.high %v2203, %v2218
    %v2229 = vunpack.c.l.s4 1934713408
    %v2230 = vunpack.c.0.s8 %v2229
    %v2231 = vlaneseq
    %v2232 = vshrl.u32 %v2231, 7
    %v2233 = vsub.s32 %v2230, %v2232
    %v2234 = vrot.slane %v2226, %v2233
    %v2236 = vunpack.c.l.s4 1934713408
    %v2237 = vunpack.c.0.s8 %v2236
    %v2238 = vlaneseq
    %v2239 = vshrl.u32 %v2238, 7
    %v2240 = vsub.s32 %v2237, %v2239
    %v2241 = vrot.slane %v2227, %v2240
    %v2242 = vcombine.low %v2210, %v2225
    %v2243 = vcombine.high %v2210, %v2225
    %v2245 = vunpack.c.l.s4 1934713408
    %v2246 = vunpack.c.0.s8 %v2245
    %v2247 = vlaneseq
    %v2248 = vshrl.u32 %v2247, 7
    %v2249 = vsub.s32 %v2246, %v2248
    %v2250 = vrot.slane %v2242, %v2249
    %v2252 = vunpack.c.l.s4 1934713408
    %v2253 = vunpack.c.0.s8 %v2252
    %v2254 = vlaneseq
    %v2255 = vshrl.u32 %v2254, 7
    %v2256 = vsub.s32 %v2253, %v2255
    %v2257 = vrot.slane %v2243, %v2256
    %v2258 = vcombine.high %v2234, 0.0
    %v2259 = vcombine.high %v2241, 0.0
    %v2260 = vcombine.high %v2250, 0.0
    %v2261 = vcombine.high %v2257, 0.0
    %vm2262 = vcmask 254976
    %2263 = vst.msk [vmem:[#allocation2] sm:$0x3] %vm2262, %v2234
    %2264 = vst.msk [vmem:[#allocation2 + $0x2] sm:$0x3] %vm2262, %v2258
    %2265 = vst.msk [vmem:[#allocation2 + $0x4] sm:$0x3] %vm2262, %v2241
    %2266 = vst.msk [vmem:[#allocation2 + $0x6] sm:$0x3] %vm2262, %v2259
    %2267 = vst.msk [vmem:[#allocation2 + $0x8] sm:$0x3] %vm2262, %v2250
    %2268 = vst.msk [vmem:[#allocation2 + $0xa] sm:$0x3] %vm2262, %v2260
    %2269 = vst.msk [vmem:[#allocation2 + $0xc] sm:$0x3] %vm2262, %v2257
    %2270 = vst.msk [vmem:[#allocation2 + $0xe] sm:$0x3] %vm2262, %v2261
    // Predicated region
    $region54: #{tpu_custom_call.1} parent=1 // pred_check
      _
    $region55: #{tpu_custom_call.1} parent=1 // pred_check_branch
      %2272 = sbr.rel (0) target = $region57
    $region56: #{tpu_custom_call.1} parent=1 // pred_region
      %s2274 = ssub.s32 256, 256
      %2275 = vsyncadd [#allocation3], %s2274
      %s2276 = sshll.u32 [#allocation2], 4
      %s2277 = int_to_ptr.vmem [resolvable:$true] %s2276
      %2282 = dma.vmem_to_hbm [thread:$0]  %s2277, 256, %s13, [#allocation3], 32, 32, 2
    $region57: #{tpu_custom_call.1} parent=1 // pred_fallthru
      _
    // Predicated region
    $region58: #{tpu_custom_call.1} parent=1 // pred_check
      _
    $region59: #{tpu_custom_call.1} parent=1 // pred_check_branch
      %2284 = sbr.rel (0) target = $region61
    $region60: #{tpu_custom_call.1} parent=1 // pred_region
      %2285 = dma.done [#allocation3], 256
    $region61: #{tpu_custom_call.1} parent=1 // pred_fallthru
      _
    %2286 = vsyncpa [#allocation3], 1

</llo_original>
